<compile_context>
chip_gen: v7x
topology: tpu7x:2x2x1
jax: 0.10.0
libtpu: 0.0.40
codegen_flags: <defaults>
</compile_context>

<pallas_src>
import numpy as np
import jax
import jax.numpy as jnp
from jax.experimental import pallas as pl
from jax.experimental.pallas import tpu as pltpu

NEG_SLOPE = 0.2
C_PAD = 128          # pad every channel dimension to the full lane width


def _round_up(x, m):
    return ((x + m - 1) // m) * m


def _leaky_relu(x, negative_slope):
    return jnp.where(x >= 0.0, x, negative_slope * x)


# ---------------------------------------------------------------------------
# Fused Pallas kernel: conv layers + adaptive avg pool + sigmoid, all in VMEM
# ---------------------------------------------------------------------------
def _make_fused_kernel(num_hidden_layers, negative_slope):
    """kernel(patches0, w0, b0, [sel_l, w_l, b_l]*, pool, out)."""

    def kernel(*refs):
        o_ref = refs[-1]
        pool_ref = refs[-2]
        p0_ref, w0_ref, b0_ref = refs[0], refs[1], refs[2]

        # ---- layer 0: (im2col patches) @ W  + bias, LeakyReLU (f32 acc) ----
        acc = jnp.dot(p0_ref[...], w0_ref[...],
                      preferred_element_type=jnp.float32)
        act = _leaky_relu(acc + b0_ref[...], negative_slope)   # (M0, C_PAD) f32

        # ---- hidden layers: VMEM-resident patch gather via one-hot matmul --
        ref_idx = 3
        for _ in range(num_hidden_layers):
            sel_ref = refs[ref_idx]
            w_ref = refs[ref_idx + 1]
            b_ref = refs[ref_idx + 2]
            ref_idx += 3

            act_bf = act.astype(jnp.bfloat16)
            n_taps, m_out, _ = sel_ref.shape
            acc = jnp.zeros((m_out, C_PAD), jnp.float32) + b_ref[...]
            for p in range(n_taps):          # static unroll over k*k taps
                gathered = jnp.dot(sel_ref[p], act_bf,
                                   preferred_element_type=jnp.float32)
                acc = acc + jnp.dot(gathered.astype(jnp.bfloat16), w_ref[p],
                                    preferred_element_type=jnp.float32)
            act = _leaky_relu(acc, negative_slope)              # (M_l, C_PAD)

        # ---- AdaptiveAvgPool3d(1) over (C, H, W) per sample + sigmoid ------
        # pool_ref is (N, M_last) with 1/(C*H*W) in the rows of each sample;
        # padded channels of `act` are exactly zero, so summing all 128 lanes
        # equals summing the real channels.
        pooled = jnp.dot(pool_ref[...], act,
                         preferred_element_type=jnp.float32)    # (N, C_PAD)
        mean = jnp.sum(pooled, axis=1, keepdims=True)           # (N, 1)
        # exact sigmoid (approx reciprocal could nudge outputs past (0, 1))
        o_ref[...] = 1.0 / (1.0 + jnp.exp(-mean))

    return kernel


# ---------------------------------------------------------------------------
# Wrapper-side glue (layer-0 patches, constant selection / pooling matrices)
# ---------------------------------------------------------------------------
def im2col(x_nhwc, k, stride, pad):
    x = jnp.pad(x_nhwc, ((0, 0), (pad, pad), (pad, pad), (0, 0)))
    n, h, w, c = x.shape
    oh = (h - k) // stride + 1
    ow = (w - k) // stride + 1
    cols = []
    for i in range(k):
        for j in range(k):
            cols.append(x[:, i:i + stride * oh:stride, j:j + stride * ow:stride, :])
    patches = jnp.stack(cols, axis=3)            # (N, OH, OW, k*k, C)
    patches = patches.reshape(n * oh * ow, k * k * c)
    return patches, (n, oh, ow)


def _build_tap_selection(n, ih, iw, k, stride, pad):
    """One-hot row-selection matrices (k*k, N*OH*OW, N*IH*IW); zero rows = padding."""
    oh = (ih + 2 * pad - k) // stride + 1
    ow = (iw + 2 * pad - k) // stride + 1
    sel = np.zeros((k * k, n * oh * ow, n * ih * iw), np.float32)
    for di in range(k):
        for dj in range(k):
            p = di * k + dj
            for b in range(n):
                for r in range(oh):
                    for c in range(ow):
                        src_r = stride * r + di - pad
                        src_c = stride * c + dj - pad
                        if 0 <= src_r < ih and 0 <= src_c < iw:
                            dst = b * oh * ow + r * ow + c
                            src = b * ih * iw + src_r * iw + src_c
                            sel[p, dst, src] = 1.0
    return sel, (oh, ow)


def _full_spec(arr):
    zeros = (0,) * arr.ndim
    return pl.BlockSpec(arr.shape, lambda i, _z=zeros: _z)


def init_params(key, in_channels, out_channels, kernel_sizes):
    """Deterministic synthetic parameters (Conv2d weight + bias per layer)."""
    params = []
    cin = in_channels
    for layer, (cout, k) in enumerate(zip(out_channels, kernel_sizes)):
        kw, kb = jax.random.split(jax.random.fold_in(key, layer))
        fan_in = cin * k * k
        # stored in (kh, kw, cin, cout) to match im2col / tap column order
        w = jax.random.normal(kw, (k, k, cin, cout), jnp.float32) / jnp.sqrt(fan_in)
        b = 0.01 * jax.random.normal(kb, (1, cout), jnp.float32)
        params.append((w, b))
        cin = cout
    return params


def discriminator_forward(x_nchw, params, kernel_sizes, strides,
                          negative_slope=NEG_SLOPE):
    x = jnp.transpose(x_nchw, (0, 2, 3, 1)).astype(jnp.float32)   # NCHW -> NHWC
    n = x.shape[0]

    # ----- layer 0: patches built in the wrapper (input is tiny), bf16 ------
    k0, s0 = kernel_sizes[0], strides[0]
    w0, b0 = params[0]
    cout0 = w0.shape[3]
    patches, (_, oh, ow) = im2col(x, k0, s0, k0 // 2)
    k_dim = patches.shape[1]
    k_pad = _round_up(k_dim, 128)                 # lane-dense MXU contraction
    patches = jnp.pad(patches, ((0, 0), (0, k_pad - k_dim))).astype(jnp.bfloat16)
    w0_pad = jnp.zeros((k_pad, C_PAD), jnp.float32)
    w0_pad = w0_pad.at[:k_dim, :cout0].set(w0.reshape(k_dim, cout0))
    w0_pad = w0_pad.astype(jnp.bfloat16)
    b0_pad = jnp.zeros((1, C_PAD), jnp.float32).at[:, :cout0].set(b0)

    inputs = [patches, w0_pad, b0_pad]

    # ----- hidden layers: constants for the in-kernel patch gather ----------
    ih, iw, c_prev = oh, ow, cout0
    for (w_l, b_l), k, s in zip(params[1:], kernel_sizes[1:], strides[1:]):
        cout = w_l.shape[3]
        sel_np, (oh, ow) = _build_tap_selection(n, ih, iw, k, s, k // 2)
        sel = jnp.asarray(sel_np, jnp.bfloat16)
        w_pad = jnp.zeros((k * k, C_PAD, C_PAD), jnp.float32)
        w_pad = w_pad.at[:, :c_prev, :cout].set(w_l.reshape(k * k, c_prev, cout))
        w_pad = w_pad.astype(jnp.bfloat16)
        b_pad = jnp.zeros((1, C_PAD), jnp.float32).at[:, :cout].set(b_l)
        inputs += [sel, w_pad, b_pad]
        ih, iw, c_prev = oh, ow, cout

    # ----- pooling matrix: mean over (C, H, W) of each sample ---------------
    m_last = n * ih * iw
    pool_np = np.zeros((n, m_last), np.float32)
    rows_per_sample = ih * iw
    inv = 1.0 / float(c_prev * ih * iw)
    for b_idx in range(n):
        pool_np[b_idx, b_idx * rows_per_sample:(b_idx + 1) * rows_per_sample] = inv
    inputs.append(jnp.asarray(pool_np))

    kernel = _make_fused_kernel(len(params) - 1, negative_slope)
    out = pl.pallas_call(
        kernel,
        out_shape=jax.ShapeDtypeStruct((n, 1), jnp.float32),
        grid=(1,),
        in_specs=[_full_spec(a) for a in inputs],
        out_specs=pl.BlockSpec((n, 1), lambda i: (0, 0)),
        compiler_params=pltpu.CompilerParams(
            dimension_semantics=("arbitrary",)),
    )(*inputs)
    return out.reshape(n, 1, 1, 1)


# ---------------------------------------------------------------------------
if __name__ == "__main__":
    key = jax.random.PRNGKey(0)

    in_channels = 4
    out_channels = [8, 16]
    kernel_sizes = [3, 3]
    strides = [2, 2]

    kx, kp = jax.random.split(key)
    x = jax.random.normal(kx, (2, in_channels, 16, 16), jnp.float32)  # NCHW
    params = init_params(kp, in_channels, out_channels, kernel_sizes)

    out = discriminator_forward(x, params, kernel_sizes, strides)
    out = jax.block_until_ready(out)

    assert out.shape == (2, 1, 1, 1), out.shape
    assert bool(jnp.all((out > 0.0) & (out < 1.0)))
    print("KERNEL_OK")
</pallas_src>

<mosaic_0001>
module attributes {stable_mosaic.version = 11 : i64} {
  func.func @kernel(%arg0: i32, %arg1: memref<128x128xbf16, #tpu.memory_space<vmem>>, %arg2: memref<128x128xbf16, #tpu.memory_space<vmem>>, %arg3: memref<1x128xf32, #tpu.memory_space<vmem>>, %arg4: memref<9x32x128xbf16, #tpu.memory_space<vmem>>, %arg5: memref<9x128x128xbf16, #tpu.memory_space<vmem>>, %arg6: memref<1x128xf32, #tpu.memory_space<vmem>>, %arg7: memref<2x32xf32, #tpu.memory_space<vmem>>, %arg8: memref<2x1xf32, #tpu.memory_space<vmem>>) attributes {dimension_semantics = [#tpu.dimension_semantics<arbitrary>], iteration_bounds = array<i64: 1>, scalar_prefetch = 0 : i64, scratch_operands = 0 : i64, tpu.core_type = #tpu.core_type<tc>, window_params = [{pipeline_mode = #tpu.pipeline_mode<synchronous>, transform_indices = @transform_0, window_bounds = array<i64: 128, 128>}, {pipeline_mode = #tpu.pipeline_mode<synchronous>, transform_indices = @transform_1, window_bounds = array<i64: 128, 128>}, {pipeline_mode = #tpu.pipeline_mode<synchronous>, transform_indices = @transform_2, window_bounds = array<i64: 1, 128>}, {pipeline_mode = #tpu.pipeline_mode<synchronous>, transform_indices = @transform_3, window_bounds = array<i64: 9, 32, 128>}, {pipeline_mode = #tpu.pipeline_mode<synchronous>, transform_indices = @transform_4, window_bounds = array<i64: 9, 128, 128>}, {pipeline_mode = #tpu.pipeline_mode<synchronous>, transform_indices = @transform_5, window_bounds = array<i64: 1, 128>}, {pipeline_mode = #tpu.pipeline_mode<synchronous>, transform_indices = @transform_6, window_bounds = array<i64: 2, 32>}, {pipeline_mode = #tpu.pipeline_mode<synchronous>, transform_indices = @transform_7, window_bounds = array<i64: 2, 1>}]} {
    %c0 = arith.constant 0 : index
    %c0_0 = arith.constant 0 : index
    %0 = vector.load %arg1[%c0, %c0_0] : memref<128x128xbf16, #tpu.memory_space<vmem>>, vector<128x128xbf16>
    %c0_1 = arith.constant 0 : index
    %c0_2 = arith.constant 0 : index
    %1 = vector.load %arg2[%c0_1, %c0_2] : memref<128x128xbf16, #tpu.memory_space<vmem>>, vector<128x128xbf16>
    %cst = arith.constant dense<0.000000e+00> : vector<128x128xf32>
    %2 = tpu.matmul %0, %1, %cst {dimension_numbers = #tpu.dot_dimension_numbers<[1], [0], [0], [1], [0, 0, 1, 1], [], []>} : vector<128x128xbf16>, vector<128x128xbf16>, vector<128x128xf32> -> vector<128x128xf32>
    %c0_3 = arith.constant 0 : index
    %c0_4 = arith.constant 0 : index
    %3 = vector.load %arg3[%c0_3, %c0_4] : memref<1x128xf32, #tpu.memory_space<vmem>>, vector<1x128xf32>
    %4 = vector.broadcast %3 : vector<1x128xf32> to vector<128x128xf32>
    %5 = arith.addf %2, %4 : vector<128x128xf32>
    %cst_5 = arith.constant 0.000000e+00 : f32
    %6 = vector.broadcast %cst_5 : f32 to vector<128x128xf32>
    %7 = arith.cmpf oge, %5, %6 : vector<128x128xf32>
    %cst_6 = arith.constant 2.000000e-01 : f32
    %8 = vector.broadcast %cst_6 : f32 to vector<128x128xf32>
    %9 = arith.mulf %8, %5 : vector<128x128xf32>
    %10 = arith.select %7, %5, %9 : vector<128x128xi1>, vector<128x128xf32>
    %11 = arith.truncf %10 : vector<128x128xf32> to vector<128x128xbf16>
    %cst_7 = arith.constant 0.000000e+00 : f32
    %12 = vector.broadcast %cst_7 : f32 to vector<32x128xf32>
    %c0_8 = arith.constant 0 : index
    %c0_9 = arith.constant 0 : index
    %13 = vector.load %arg6[%c0_8, %c0_9] : memref<1x128xf32, #tpu.memory_space<vmem>>, vector<1x128xf32>
    %14 = vector.broadcast %13 : vector<1x128xf32> to vector<32x128xf32>
    %15 = arith.addf %12, %14 : vector<32x128xf32>
    %c0_10 = arith.constant 0 : index
    %c0_11 = arith.constant 0 : index
    %c0_12 = arith.constant 0 : index
    %16 = vector.load %arg4[%c0_10, %c0_11, %c0_12] : memref<9x32x128xbf16, #tpu.memory_space<vmem>>, vector<1x32x128xbf16>
    %17 = vector.shape_cast %16 : vector<1x32x128xbf16> to vector<32x128xbf16>
    %cst_13 = arith.constant dense<0.000000e+00> : vector<32x128xf32>
    %18 = tpu.matmul %17, %11, %cst_13 {dimension_numbers = #tpu.dot_dimension_numbers<[1], [0], [0], [1], [0, 0, 1, 1], [], []>} : vector<32x128xbf16>, vector<128x128xbf16>, vector<32x128xf32> -> vector<32x128xf32>
    %19 = arith.truncf %18 : vector<32x128xf32> to vector<32x128xbf16>
    %c0_14 = arith.constant 0 : index
    %c0_15 = arith.constant 0 : index
    %c0_16 = arith.constant 0 : index
    %20 = vector.load %arg5[%c0_14, %c0_15, %c0_16] : memref<9x128x128xbf16, #tpu.memory_space<vmem>>, vector<1x128x128xbf16>
    %21 = vector.shape_cast %20 : vector<1x128x128xbf16> to vector<128x128xbf16>
    %cst_17 = arith.constant dense<0.000000e+00> : vector<32x128xf32>
    %22 = tpu.matmul %19, %21, %cst_17 {dimension_numbers = #tpu.dot_dimension_numbers<[1], [0], [0], [1], [0, 0, 1, 1], [], []>} : vector<32x128xbf16>, vector<128x128xbf16>, vector<32x128xf32> -> vector<32x128xf32>
    %23 = arith.addf %15, %22 : vector<32x128xf32>
    %c1 = arith.constant 1 : index
    %c0_18 = arith.constant 0 : index
    %c0_19 = arith.constant 0 : index
    %24 = vector.load %arg4[%c1, %c0_18, %c0_19] : memref<9x32x128xbf16, #tpu.memory_space<vmem>>, vector<1x32x128xbf16>
    %25 = vector.shape_cast %24 : vector<1x32x128xbf16> to vector<32x128xbf16>
    %cst_20 = arith.constant dense<0.000000e+00> : vector<32x128xf32>
    %26 = tpu.matmul %25, %11, %cst_20 {dimension_numbers = #tpu.dot_dimension_numbers<[1], [0], [0], [1], [0, 0, 1, 1], [], []>} : vector<32x128xbf16>, vector<128x128xbf16>, vector<32x128xf32> -> vector<32x128xf32>
    %27 = arith.truncf %26 : vector<32x128xf32> to vector<32x128xbf16>
    %c1_21 = arith.constant 1 : index
    %c0_22 = arith.constant 0 : index
    %c0_23 = arith.constant 0 : index
    %28 = vector.load %arg5[%c1_21, %c0_22, %c0_23] : memref<9x128x128xbf16, #tpu.memory_space<vmem>>, vector<1x128x128xbf16>
    %29 = vector.shape_cast %28 : vector<1x128x128xbf16> to vector<128x128xbf16>
    %cst_24 = arith.constant dense<0.000000e+00> : vector<32x128xf32>
    %30 = tpu.matmul %27, %29, %cst_24 {dimension_numbers = #tpu.dot_dimension_numbers<[1], [0], [0], [1], [0, 0, 1, 1], [], []>} : vector<32x128xbf16>, vector<128x128xbf16>, vector<32x128xf32> -> vector<32x128xf32>
    %31 = arith.addf %23, %30 : vector<32x128xf32>
    %c2 = arith.constant 2 : index
    %c0_25 = arith.constant 0 : index
    %c0_26 = arith.constant 0 : index
    %32 = vector.load %arg4[%c2, %c0_25, %c0_26] : memref<9x32x128xbf16, #tpu.memory_space<vmem>>, vector<1x32x128xbf16>
    %33 = vector.shape_cast %32 : vector<1x32x128xbf16> to vector<32x128xbf16>
    %cst_27 = arith.constant dense<0.000000e+00> : vector<32x128xf32>
    %34 = tpu.matmul %33, %11, %cst_27 {dimension_numbers = #tpu.dot_dimension_numbers<[1], [0], [0], [1], [0, 0, 1, 1], [], []>} : vector<32x128xbf16>, vector<128x128xbf16>, vector<32x128xf32> -> vector<32x128xf32>
    %35 = arith.truncf %34 : vector<32x128xf32> to vector<32x128xbf16>
    %c2_28 = arith.constant 2 : index
    %c0_29 = arith.constant 0 : index
    %c0_30 = arith.constant 0 : index
    %36 = vector.load %arg5[%c2_28, %c0_29, %c0_30] : memref<9x128x128xbf16, #tpu.memory_space<vmem>>, vector<1x128x128xbf16>
    %37 = vector.shape_cast %36 : vector<1x128x128xbf16> to vector<128x128xbf16>
    %cst_31 = arith.constant dense<0.000000e+00> : vector<32x128xf32>
    %38 = tpu.matmul %35, %37, %cst_31 {dimension_numbers = #tpu.dot_dimension_numbers<[1], [0], [0], [1], [0, 0, 1, 1], [], []>} : vector<32x128xbf16>, vector<128x128xbf16>, vector<32x128xf32> -> vector<32x128xf32>
    %39 = arith.addf %31, %38 : vector<32x128xf32>
    %c3 = arith.constant 3 : index
    %c0_32 = arith.constant 0 : index
    %c0_33 = arith.constant 0 : index
    %40 = vector.load %arg4[%c3, %c0_32, %c0_33] : memref<9x32x128xbf16, #tpu.memory_space<vmem>>, vector<1x32x128xbf16>
    %41 = vector.shape_cast %40 : vector<1x32x128xbf16> to vector<32x128xbf16>
    %cst_34 = arith.constant dense<0.000000e+00> : vector<32x128xf32>
    %42 = tpu.matmul %41, %11, %cst_34 {dimension_numbers = #tpu.dot_dimension_numbers<[1], [0], [0], [1], [0, 0, 1, 1], [], []>} : vector<32x128xbf16>, vector<128x128xbf16>, vector<32x128xf32> -> vector<32x128xf32>
    %43 = arith.truncf %42 : vector<32x128xf32> to vector<32x128xbf16>
    %c3_35 = arith.constant 3 : index
    %c0_36 = arith.constant 0 : index
    %c0_37 = arith.constant 0 : index
    %44 = vector.load %arg5[%c3_35, %c0_36, %c0_37] : memref<9x128x128xbf16, #tpu.memory_space<vmem>>, vector<1x128x128xbf16>
    %45 = vector.shape_cast %44 : vector<1x128x128xbf16> to vector<128x128xbf16>
    %cst_38 = arith.constant dense<0.000000e+00> : vector<32x128xf32>
    %46 = tpu.matmul %43, %45, %cst_38 {dimension_numbers = #tpu.dot_dimension_numbers<[1], [0], [0], [1], [0, 0, 1, 1], [], []>} : vector<32x128xbf16>, vector<128x128xbf16>, vector<32x128xf32> -> vector<32x128xf32>
    %47 = arith.addf %39, %46 : vector<32x128xf32>
    %c4 = arith.constant 4 : index
    %c0_39 = arith.constant 0 : index
    %c0_40 = arith.constant 0 : index
    %48 = vector.load %arg4[%c4, %c0_39, %c0_40] : memref<9x32x128xbf16, #tpu.memory_space<vmem>>, vector<1x32x128xbf16>
    %49 = vector.shape_cast %48 : vector<1x32x128xbf16> to vector<32x128xbf16>
    %cst_41 = arith.constant dense<0.000000e+00> : vector<32x128xf32>
    %50 = tpu.matmul %49, %11, %cst_41 {dimension_numbers = #tpu.dot_dimension_numbers<[1], [0], [0], [1], [0, 0, 1, 1], [], []>} : vector<32x128xbf16>, vector<128x128xbf16>, vector<32x128xf32> -> vector<32x128xf32>
    %51 = arith.truncf %50 : vector<32x128xf32> to vector<32x128xbf16>
    %c4_42 = arith.constant 4 : index
    %c0_43 = arith.constant 0 : index
    %c0_44 = arith.constant 0 : index
    %52 = vector.load %arg5[%c4_42, %c0_43, %c0_44] : memref<9x128x128xbf16, #tpu.memory_space<vmem>>, vector<1x128x128xbf16>
    %53 = vector.shape_cast %52 : vector<1x128x128xbf16> to vector<128x128xbf16>
    %cst_45 = arith.constant dense<0.000000e+00> : vector<32x128xf32>
    %54 = tpu.matmul %51, %53, %cst_45 {dimension_numbers = #tpu.dot_dimension_numbers<[1], [0], [0], [1], [0, 0, 1, 1], [], []>} : vector<32x128xbf16>, vector<128x128xbf16>, vector<32x128xf32> -> vector<32x128xf32>
    %55 = arith.addf %47, %54 : vector<32x128xf32>
    %c5 = arith.constant 5 : index
    %c0_46 = arith.constant 0 : index
    %c0_47 = arith.constant 0 : index
    %56 = vector.load %arg4[%c5, %c0_46, %c0_47] : memref<9x32x128xbf16, #tpu.memory_space<vmem>>, vector<1x32x128xbf16>
    %57 = vector.shape_cast %56 : vector<1x32x128xbf16> to vector<32x128xbf16>
    %cst_48 = arith.constant dense<0.000000e+00> : vector<32x128xf32>
    %58 = tpu.matmul %57, %11, %cst_48 {dimension_numbers = #tpu.dot_dimension_numbers<[1], [0], [0], [1], [0, 0, 1, 1], [], []>} : vector<32x128xbf16>, vector<128x128xbf16>, vector<32x128xf32> -> vector<32x128xf32>
    %59 = arith.truncf %58 : vector<32x128xf32> to vector<32x128xbf16>
    %c5_49 = arith.constant 5 : index
    %c0_50 = arith.constant 0 : index
    %c0_51 = arith.constant 0 : index
    %60 = vector.load %arg5[%c5_49, %c0_50, %c0_51] : memref<9x128x128xbf16, #tpu.memory_space<vmem>>, vector<1x128x128xbf16>
    %61 = vector.shape_cast %60 : vector<1x128x128xbf16> to vector<128x128xbf16>
    %cst_52 = arith.constant dense<0.000000e+00> : vector<32x128xf32>
    %62 = tpu.matmul %59, %61, %cst_52 {dimension_numbers = #tpu.dot_dimension_numbers<[1], [0], [0], [1], [0, 0, 1, 1], [], []>} : vector<32x128xbf16>, vector<128x128xbf16>, vector<32x128xf32> -> vector<32x128xf32>
    %63 = arith.addf %55, %62 : vector<32x128xf32>
    %c6 = arith.constant 6 : index
    %c0_53 = arith.constant 0 : index
    %c0_54 = arith.constant 0 : index
    %64 = vector.load %arg4[%c6, %c0_53, %c0_54] : memref<9x32x128xbf16, #tpu.memory_space<vmem>>, vector<1x32x128xbf16>
    %65 = vector.shape_cast %64 : vector<1x32x128xbf16> to vector<32x128xbf16>
    %cst_55 = arith.constant dense<0.000000e+00> : vector<32x128xf32>
    %66 = tpu.matmul %65, %11, %cst_55 {dimension_numbers = #tpu.dot_dimension_numbers<[1], [0], [0], [1], [0, 0, 1, 1], [], []>} : vector<32x128xbf16>, vector<128x128xbf16>, vector<32x128xf32> -> vector<32x128xf32>
    %67 = arith.truncf %66 : vector<32x128xf32> to vector<32x128xbf16>
    %c6_56 = arith.constant 6 : index
    %c0_57 = arith.constant 0 : index
    %c0_58 = arith.constant 0 : index
    %68 = vector.load %arg5[%c6_56, %c0_57, %c0_58] : memref<9x128x128xbf16, #tpu.memory_space<vmem>>, vector<1x128x128xbf16>
    %69 = vector.shape_cast %68 : vector<1x128x128xbf16> to vector<128x128xbf16>
    %cst_59 = arith.constant dense<0.000000e+00> : vector<32x128xf32>
    %70 = tpu.matmul %67, %69, %cst_59 {dimension_numbers = #tpu.dot_dimension_numbers<[1], [0], [0], [1], [0, 0, 1, 1], [], []>} : vector<32x128xbf16>, vector<128x128xbf16>, vector<32x128xf32> -> vector<32x128xf32>
    %71 = arith.addf %63, %70 : vector<32x128xf32>
    %c7 = arith.constant 7 : index
    %c0_60 = arith.constant 0 : index
    %c0_61 = arith.constant 0 : index
    %72 = vector.load %arg4[%c7, %c0_60, %c0_61] : memref<9x32x128xbf16, #tpu.memory_space<vmem>>, vector<1x32x128xbf16>
    %73 = vector.shape_cast %72 : vector<1x32x128xbf16> to vector<32x128xbf16>
    %cst_62 = arith.constant dense<0.000000e+00> : vector<32x128xf32>
    %74 = tpu.matmul %73, %11, %cst_62 {dimension_numbers = #tpu.dot_dimension_numbers<[1], [0], [0], [1], [0, 0, 1, 1], [], []>} : vector<32x128xbf16>, vector<128x128xbf16>, vector<32x128xf32> -> vector<32x128xf32>
    %75 = arith.truncf %74 : vector<32x128xf32> to vector<32x128xbf16>
    %c7_63 = arith.constant 7 : index
    %c0_64 = arith.constant 0 : index
    %c0_65 = arith.constant 0 : index
    %76 = vector.load %arg5[%c7_63, %c0_64, %c0_65] : memref<9x128x128xbf16, #tpu.memory_space<vmem>>, vector<1x128x128xbf16>
    %77 = vector.shape_cast %76 : vector<1x128x128xbf16> to vector<128x128xbf16>
    %cst_66 = arith.constant dense<0.000000e+00> : vector<32x128xf32>
    %78 = tpu.matmul %75, %77, %cst_66 {dimension_numbers = #tpu.dot_dimension_numbers<[1], [0], [0], [1], [0, 0, 1, 1], [], []>} : vector<32x128xbf16>, vector<128x128xbf16>, vector<32x128xf32> -> vector<32x128xf32>
    %79 = arith.addf %71, %78 : vector<32x128xf32>
    %c8 = arith.constant 8 : index
    %c0_67 = arith.constant 0 : index
    %c0_68 = arith.constant 0 : index
    %80 = vector.load %arg4[%c8, %c0_67, %c0_68] : memref<9x32x128xbf16, #tpu.memory_space<vmem>>, vector<1x32x128xbf16>
    %81 = vector.shape_cast %80 : vector<1x32x128xbf16> to vector<32x128xbf16>
    %cst_69 = arith.constant dense<0.000000e+00> : vector<32x128xf32>
    %82 = tpu.matmul %81, %11, %cst_69 {dimension_numbers = #tpu.dot_dimension_numbers<[1], [0], [0], [1], [0, 0, 1, 1], [], []>} : vector<32x128xbf16>, vector<128x128xbf16>, vector<32x128xf32> -> vector<32x128xf32>
    %83 = arith.truncf %82 : vector<32x128xf32> to vector<32x128xbf16>
    %c8_70 = arith.constant 8 : index
    %c0_71 = arith.constant 0 : index
    %c0_72 = arith.constant 0 : index
    %84 = vector.load %arg5[%c8_70, %c0_71, %c0_72] : memref<9x128x128xbf16, #tpu.memory_space<vmem>>, vector<1x128x128xbf16>
    %85 = vector.shape_cast %84 : vector<1x128x128xbf16> to vector<128x128xbf16>
    %cst_73 = arith.constant dense<0.000000e+00> : vector<32x128xf32>
    %86 = tpu.matmul %83, %85, %cst_73 {dimension_numbers = #tpu.dot_dimension_numbers<[1], [0], [0], [1], [0, 0, 1, 1], [], []>} : vector<32x128xbf16>, vector<128x128xbf16>, vector<32x128xf32> -> vector<32x128xf32>
    %87 = arith.addf %79, %86 : vector<32x128xf32>
    %cst_74 = arith.constant 0.000000e+00 : f32
    %88 = vector.broadcast %cst_74 : f32 to vector<32x128xf32>
    %89 = arith.cmpf oge, %87, %88 : vector<32x128xf32>
    %cst_75 = arith.constant 2.000000e-01 : f32
    %90 = vector.broadcast %cst_75 : f32 to vector<32x128xf32>
    %91 = arith.mulf %90, %87 : vector<32x128xf32>
    %92 = arith.select %89, %87, %91 : vector<32x128xi1>, vector<32x128xf32>
    %c0_76 = arith.constant 0 : index
    %c0_77 = arith.constant 0 : index
    %93 = vector.load %arg7[%c0_76, %c0_77] : memref<2x32xf32, #tpu.memory_space<vmem>>, vector<2x32xf32>
    %cst_78 = arith.constant dense<0.000000e+00> : vector<2x128xf32>
    %94 = tpu.matmul %93, %92, %cst_78 {dimension_numbers = #tpu.dot_dimension_numbers<[1], [0], [0], [1], [0, 0, 1, 1], [], []>} : vector<2x32xf32>, vector<32x128xf32>, vector<2x128xf32> -> vector<2x128xf32>
    %cst_79 = arith.constant dense<0.000000e+00> : vector<2xf32>
    %95 = vector.multi_reduction <add>, %94, %cst_79 [1] : vector<2x128xf32> to vector<2xf32>
    %96 = vector.shape_cast %95 : vector<2xf32> to vector<2x1xf32>
    %cst_80 = arith.constant 0.000000e+00 : f32
    %97 = vector.broadcast %cst_80 : f32 to vector<2x1xf32>
    %98 = arith.subf %97, %96 : vector<2x1xf32>
    %99 = math.exp %98 : vector<2x1xf32>
    %cst_81 = arith.constant 1.000000e+00 : f32
    %100 = vector.broadcast %cst_81 : f32 to vector<2x1xf32>
    %101 = arith.addf %100, %99 : vector<2x1xf32>
    %cst_82 = arith.constant 1.000000e+00 : f32
    %102 = vector.broadcast %cst_82 : f32 to vector<2x1xf32>
    %103 = arith.divf %102, %101 : vector<2x1xf32>
    %c0_83 = arith.constant 0 : index
    %c0_84 = arith.constant 0 : index
    %104 = vector.load %arg8[%c0_83, %c0_84] : memref<2x1xf32, #tpu.memory_space<vmem>>, vector<2x1xf32>
    tpu.vector_store %arg8[%c0_83, %c0_84], %103 {strides = array<i32>} : memref<2x1xf32, #tpu.memory_space<vmem>>, vector<2x1xf32>,
    return
  }
  func.func @transform_0(%arg0: i32) -> (i32, i32) {
    %c0_i32 = arith.constant 0 : i32
    %c0_i32_0 = arith.constant 0 : i32
    %c0_i32_1 = arith.constant 0 : i32
    return %c0_i32, %c0_i32_0 : i32, i32
  }
  func.func @transform_1(%arg0: i32) -> (i32, i32) {
    %c0_i32 = arith.constant 0 : i32
    %c0_i32_0 = arith.constant 0 : i32
    %c0_i32_1 = arith.constant 0 : i32
    return %c0_i32, %c0_i32_0 : i32, i32
  }
  func.func @transform_2(%arg0: i32) -> (i32, i32) {
    %c0_i32 = arith.constant 0 : i32
    %c0_i32_0 = arith.constant 0 : i32
    %c0_i32_1 = arith.constant 0 : i32
    return %c0_i32, %c0_i32_0 : i32, i32
  }
  func.func @transform_3(%arg0: i32) -> (i32, i32, i32) {
    %c0_i32 = arith.constant 0 : i32
    %c0_i32_0 = arith.constant 0 : i32
    %c0_i32_1 = arith.constant 0 : i32
    %c0_i32_2 = arith.constant 0 : i32
    return %c0_i32, %c0_i32_0, %c0_i32_1 : i32, i32, i32
  }
  func.func @transform_4(%arg0: i32) -> (i32, i32, i32) {
    %c0_i32 = arith.constant 0 : i32
    %c0_i32_0 = arith.constant 0 : i32
    %c0_i32_1 = arith.constant 0 : i32
    %c0_i32_2 = arith.constant 0 : i32
    return %c0_i32, %c0_i32_0, %c0_i32_1 : i32, i32, i32
  }
  func.func @transform_5(%arg0: i32) -> (i32, i32) {
    %c0_i32 = arith.constant 0 : i32
    %c0_i32_0 = arith.constant 0 : i32
    %c0_i32_1 = arith.constant 0 : i32
    return %c0_i32, %c0_i32_0 : i32, i32
  }
  func.func @transform_6(%arg0: i32) -> (i32, i32) {
    %c0_i32 = arith.constant 0 : i32
    %c0_i32_0 = arith.constant 0 : i32
    %c0_i32_1 = arith.constant 0 : i32
    return %c0_i32, %c0_i32_0 : i32, i32
  }
  func.func @transform_7(%arg0: i32) -> (i32, i32) {
    %c0_i32 = arith.constant 0 : i32
    %c0_i32_0 = arith.constant 0 : i32
    %c0_i32_1 = arith.constant 0 : i32
    return %c0_i32, %c0_i32_0 : i32, i32
  }
}

</mosaic_0001>

<llo_original>
// kernel: tpu_custom_call.1
$region0: #{tpu_custom_call.1}
  #allocation0 [shape = 'u32[]', space=smem, size = 0x4, offset = 0x4, fixed_abs, tag = 'smem constant byte address 0x4 - core index']
  #allocation1 [shape = 'u32[144,128]{1,0:T(1,128)}', space=vmem, size = 0x12000, scoped, tag = 'internal scratch']
  %s0 = inlined_call_operand.hbm [shape: bf16[128,128], index: 0, kind: input, shape index: {}]
  %s1 = inlined_call_operand.hbm [shape: bf16[128,128], index: 1, kind: input, shape index: {}]
  %s2 = inlined_call_operand.vmem [shape: f32[1,128], index: 2, kind: input, shape index: {}]
  %s3 = inlined_call_operand.hbm [shape: bf16[9,32,128], index: 3, kind: input, shape index: {}]
  %s4 = inlined_call_operand.hbm [shape: bf16[9,128,128], index: 4, kind: input, shape index: {}]
  %s5 = inlined_call_operand.vmem [shape: f32[1,128], index: 5, kind: input, shape index: {}]
  %s6 = inlined_call_operand.vmem [shape: f32[2,32], index: 6, kind: input, shape index: {}]
  %s7 = inlined_call_operand.vmem [shape: f32[2,1], index: 7, kind: output, shape index: {}]
  %s8 = sld [smem:[#allocation0]]
  $region54: #{tpu_custom_call.1} parent=0
    _
  %s10 = ssub.s32 1, %s8
  %s11 = scalar_select 0, %s10, %s8
  $region1: #{tpu_custom_call.1} parent=0
    #allocation2 [shape = 'u8[32768]{0}', space=vmem, size = 0x8000, scoped, tag = 'input window, operand 0, single buffered']
    #allocation3 [shape = 's32[1]{0}', space=sflag, size = 0x4, scoped, tag = 'scoped memory for tpu_custom_call.1']
    #allocation4 [shape = 'u8[32768]{0}', space=vmem, size = 0x8000, scoped, tag = 'input window, operand 1, single buffered']
    #allocation5 [shape = 's32[1]{0}', space=sflag, size = 0x4, scoped, tag = 'scoped memory for tpu_custom_call.1']
    #allocation6 [shape = 'u8[73728]{0}', space=vmem, size = 0x12000, scoped, tag = 'input window, operand 3, single buffered']
    #allocation7 [shape = 'u8[294912]{0}', space=vmem, size = 0x48000, scoped, tag = 'input window, operand 4, single buffered']
    #allocation8 [shape = 's32[1]{0}', space=sflag, size = 0x4, scoped, tag = 'scoped memory for tpu_custom_call.1']
    %12 = vsyncpa [#allocation3], 0
    %13 = vsyncpa [#allocation5], 0
    %14 = vsyncpa [#allocation8], 0
    // Predicated region
    $region2: #{tpu_custom_call.1} parent=1 // pred_check
      _
    $region3: #{tpu_custom_call.1} parent=1 // pred_check_branch
      %16 = sbr.rel (0) target = $region5
    $region4: #{tpu_custom_call.1} parent=1 // pred_region
      %s18 = ssub.s32 1024, 1024
      %19 = vsyncadd [#allocation3], %s18
      %s20 = sshll.u32 [#allocation2], 4
      %s21 = int_to_ptr.vmem [resolvable:$true] %s20
      %26 = dma.hbm_to_vmem [thread:$0]  %s0, 1024, %s21, [#allocation3], 64, 64, 4
    $region5: #{tpu_custom_call.1} parent=1 // pred_fallthru
      _
    // Predicated region
    $region6: #{tpu_custom_call.1} parent=1 // pred_check
      _
    $region7: #{tpu_custom_call.1} parent=1 // pred_check_branch
      %28 = sbr.rel (0) target = $region9
    $region8: #{tpu_custom_call.1} parent=1 // pred_region
      %s30 = ssub.s32 1024, 1024
      %31 = vsyncadd [#allocation5], %s30
      %s32 = sshll.u32 [#allocation4], 4
      %s33 = int_to_ptr.vmem [resolvable:$true] %s32
      %38 = dma.hbm_to_vmem [thread:$0]  %s1, 1024, %s33, [#allocation5], 64, 64, 4
    $region9: #{tpu_custom_call.1} parent=1 // pred_fallthru
      _
    // Predicated region
    $region10: #{tpu_custom_call.1} parent=1 // pred_check
      _
    $region11: #{tpu_custom_call.1} parent=1 // pred_check_branch
      %40 = sbr.rel (0) target = $region13
    $region12: #{tpu_custom_call.1} parent=1 // pred_region
      _
    $region13: #{tpu_custom_call.1} parent=1 // pred_fallthru
      _
    // Predicated region
    $region14: #{tpu_custom_call.1} parent=1 // pred_check
      _
    $region15: #{tpu_custom_call.1} parent=1 // pred_check_branch
      %42 = sbr.rel (0) target = $region17
    $region16: #{tpu_custom_call.1} parent=1 // pred_region
      %s44 = ssub.s32 2304, 2304
      %45 = vsyncadd [#allocation5], %s44
      %s46 = sshll.u32 [#allocation6], 4
      %s47 = int_to_ptr.vmem [resolvable:$true] %s46
      %52 = dma.hbm_to_vmem [thread:$0]  %s3, 2304, %s47, [#allocation5], 64, 64, 4
    $region17: #{tpu_custom_call.1} parent=1 // pred_fallthru
      _
    // Predicated region
    $region18: #{tpu_custom_call.1} parent=1 // pred_check
      _
    $region19: #{tpu_custom_call.1} parent=1 // pred_check_branch
      %54 = sbr.rel (0) target = $region21
    $region20: #{tpu_custom_call.1} parent=1 // pred_region
      %s56 = ssub.s32 9216, 9216
      %57 = vsyncadd [#allocation8], %s56
      %s58 = sshll.u32 [#allocation7], 4
      %s59 = int_to_ptr.vmem [resolvable:$true] %s58
      %64 = dma.hbm_to_vmem [thread:$0]  %s4, 9216, %s59, [#allocation8], 64, 64, 4
    $region21: #{tpu_custom_call.1} parent=1 // pred_fallthru
      _
    // Predicated region
    $region22: #{tpu_custom_call.1} parent=1 // pred_check
      _
    $region23: #{tpu_custom_call.1} parent=1 // pred_check_branch
      %66 = sbr.rel (0) target = $region25
    $region24: #{tpu_custom_call.1} parent=1 // pred_region
      _
    $region25: #{tpu_custom_call.1} parent=1 // pred_fallthru
      _
    // Predicated region
    $region26: #{tpu_custom_call.1} parent=1 // pred_check
      _
    $region27: #{tpu_custom_call.1} parent=1 // pred_check_branch
      %68 = sbr.rel (0) target = $region29
    $region28: #{tpu_custom_call.1} parent=1 // pred_region
      _
    $region29: #{tpu_custom_call.1} parent=1 // pred_fallthru
      _
    // Predicated region
    $region30: #{tpu_custom_call.1} parent=1 // pred_check
      _
    $region31: #{tpu_custom_call.1} parent=1 // pred_check_branch
      %70 = sbr.rel (0) target = $region33
    $region32: #{tpu_custom_call.1} parent=1 // pred_region
      %71 = dma.done [#allocation3], 1024
    $region33: #{tpu_custom_call.1} parent=1 // pred_fallthru
      _
    // Predicated region
    $region34: #{tpu_custom_call.1} parent=1 // pred_check
      _
    $region35: #{tpu_custom_call.1} parent=1 // pred_check_branch
      %73 = sbr.rel (0) target = $region37
    $region36: #{tpu_custom_call.1} parent=1 // pred_region
      %74 = dma.done [#allocation5], 1024
    $region37: #{tpu_custom_call.1} parent=1 // pred_fallthru
      _
    // Predicated region
    $region38: #{tpu_custom_call.1} parent=1 // pred_check
      _
    $region39: #{tpu_custom_call.1} parent=1 // pred_check_branch
      %76 = sbr.rel (0) target = $region41
    $region40: #{tpu_custom_call.1} parent=1 // pred_region
      %77 = dma.done [#allocation5], 2304
    $region41: #{tpu_custom_call.1} parent=1 // pred_fallthru
      _
    // Predicated region
    $region42: #{tpu_custom_call.1} parent=1 // pred_check
      _
    $region43: #{tpu_custom_call.1} parent=1 // pred_check_branch
      %79 = sbr.rel (0) target = $region45
    $region44: #{tpu_custom_call.1} parent=1 // pred_region
      %80 = dma.done [#allocation8], 9216
    $region45: #{tpu_custom_call.1} parent=1 // pred_fallthru
      _
    %v82 = vld [vmem:[#allocation2] sm:$0xf]
    %v83 = vld [vmem:[#allocation2 + $0x4] sm:$0xf]
    %v84 = vld [vmem:[#allocation2 + $0x8] sm:$0xf]
    %v85 = vld [vmem:[#allocation2 + $0xc] sm:$0xf]
    %v86 = vld [vmem:[#allocation2 + $0x10] sm:$0xf]
    %v87 = vld [vmem:[#allocation2 + $0x14] sm:$0xf]
    %v88 = vld [vmem:[#allocation2 + $0x18] sm:$0xf]
    %v89 = vld [vmem:[#allocation2 + $0x1c] sm:$0xf]
    %v90 = vld [vmem:[#allocation2 + $0x20] sm:$0xf]
    %v91 = vld [vmem:[#allocation2 + $0x24] sm:$0xf]
    %v92 = vld [vmem:[#allocation2 + $0x28] sm:$0xf]
    %v93 = vld [vmem:[#allocation2 + $0x2c] sm:$0xf]
    %v94 = vld [vmem:[#allocation2 + $0x30] sm:$0xf]
    %v95 = vld [vmem:[#allocation2 + $0x34] sm:$0xf]
    %v96 = vld [vmem:[#allocation2 + $0x38] sm:$0xf]
    %v97 = vld [vmem:[#allocation2 + $0x3c] sm:$0xf]
    %v98 = vld [vmem:[#allocation4] sm:$0xf]
    %v99 = vld [vmem:[#allocation4 + $0x4] sm:$0xf]
    %v100 = vld [vmem:[#allocation4 + $0x8] sm:$0xf]
    %v101 = vld [vmem:[#allocation4 + $0xc] sm:$0xf]
    %v102 = vld [vmem:[#allocation4 + $0x10] sm:$0xf]
    %v103 = vld [vmem:[#allocation4 + $0x14] sm:$0xf]
    %v104 = vld [vmem:[#allocation4 + $0x18] sm:$0xf]
    %v105 = vld [vmem:[#allocation4 + $0x1c] sm:$0xf]
    %v106 = vld [vmem:[#allocation4 + $0x20] sm:$0xf]
    %v107 = vld [vmem:[#allocation4 + $0x24] sm:$0xf]
    %v108 = vld [vmem:[#allocation4 + $0x28] sm:$0xf]
    %v109 = vld [vmem:[#allocation4 + $0x2c] sm:$0xf]
    %v110 = vld [vmem:[#allocation4 + $0x30] sm:$0xf]
    %v111 = vld [vmem:[#allocation4 + $0x34] sm:$0xf]
    %v112 = vld [vmem:[#allocation4 + $0x38] sm:$0xf]
    %v113 = vld [vmem:[#allocation4 + $0x3c] sm:$0xf]
    %v114 = vld [vmem:[%s2] sm:$0x1]
    %v116 = vlaneseq
    %v117 = vshrl.u32 %v116, 7
    %v118 = vsub.s32 0, %v117
    %v119 = vrot.slane %v114, %v118
    %v137 = vunpack.c.l.b16 %v82
    %v138 = vunpack.c.l.b16 %v83
    %v139 = vunpack.c.l.b16 %v84
    %v140 = vunpack.c.l.b16 %v85
    %v141 = vunpack.c.l.b16 %v86
    %v142 = vunpack.c.l.b16 %v87
    %v143 = vunpack.c.l.b16 %v88
    %v144 = vunpack.c.l.b16 %v89
    %v145 = vunpack.c.l.b16 %v90
    %v146 = vunpack.c.l.b16 %v91
    %v147 = vunpack.c.l.b16 %v92
    %v148 = vunpack.c.l.b16 %v93
    %v149 = vunpack.c.l.b16 %v94
    %v150 = vunpack.c.l.b16 %v95
    %v151 = vunpack.c.l.b16 %v96
    %v152 = vunpack.c.l.b16 %v97
    %v153 = vpack.c.b16 %v138, %v137
    %v154 = vpack.c.b16 %v140, %v139
    %v155 = vpack.c.b16 %v142, %v141
    %v156 = vpack.c.b16 %v144, %v143
    %v157 = vpack.c.b16 %v146, %v145
    %v158 = vpack.c.b16 %v148, %v147
    %v159 = vpack.c.b16 %v150, %v149
    %v160 = vpack.c.b16 %v152, %v151
    %v185 = vunpack.c.l.b16 %v98
    %v186 = vunpack.c.l.b16 %v99
    %v187 = vunpack.c.l.b16 %v100
    %v188 = vunpack.c.l.b16 %v101
    %v189 = vunpack.c.l.b16 %v102
    %v190 = vunpack.c.l.b16 %v103
    %v191 = vunpack.c.l.b16 %v104
    %v192 = vunpack.c.l.b16 %v105
    %v193 = vunpack.c.l.b16 %v106
    %v194 = vunpack.c.l.b16 %v107
    %v195 = vunpack.c.l.b16 %v108
    %v196 = vunpack.c.l.b16 %v109
    %v197 = vunpack.c.l.b16 %v110
    %v198 = vunpack.c.l.b16 %v111
    %v199 = vunpack.c.l.b16 %v112
    %v200 = vunpack.c.l.b16 %v113
    %v201 = vpack.c.b16 %v186, %v185
    %v202 = vpack.c.b16 %v188, %v187
    %v203 = vpack.c.b16 %v190, %v189
    %v204 = vpack.c.b16 %v192, %v191
    %v205 = vpack.c.b16 %v194, %v193
    %v206 = vpack.c.b16 %v196, %v195
    %v207 = vpack.c.b16 %v198, %v197
    %v208 = vpack.c.b16 %v200, %v199
    %217 = vmatprep.subr.bf16.mxu0 0
    %218 = vmatpush1.bf16.msra.mxu0 %v201
    %219 = vmatprep.subr.bf16.mxu0 0
    %220 = vmatpush1.bf16.msra.mxu0 %v202
    %221 = vmatprep.subr.bf16.mxu0 0
    %222 = vmatpush1.bf16.msra.mxu0 %v203
    %223 = vmatprep.subr.bf16.mxu0 0
    %224 = vmatpush1.bf16.msra.mxu0 %v204
    %225 = vmatprep.subr.bf16.mxu0 0
    %226 = vmatpush1.bf16.msra.mxu0 %v205
    %227 = vmatprep.subr.bf16.mxu0 0
    %228 = vmatpush1.bf16.msra.mxu0 %v206
    %229 = vmatprep.subr.bf16.mxu0 0
    %230 = vmatpush1.bf16.msra.mxu0 %v207
    %231 = vmatprep.subr.bf16.mxu0 0
    %232 = vmatpush1.bf16.msra.mxu0 %v208
    %233 = vmatprep.subr.bf16.mxu0 0
    %234 = vmatpush1.bf16.msra.mxu0 0
    %235 = vmatprep.subr.bf16.mxu0 0
    %236 = vmatpush1.bf16.msra.mxu0 0
    %237 = vmatprep.subr.bf16.mxu0 0
    %238 = vmatpush1.bf16.msra.mxu0 0
    %239 = vmatprep.subr.bf16.mxu0 0
    %240 = vmatpush1.bf16.msra.mxu0 0
    %241 = vmatprep.subr.bf16.mxu0 0
    %242 = vmatpush1.bf16.msra.mxu0 0
    %243 = vmatprep.subr.bf16.mxu0 0
    %244 = vmatpush1.bf16.msra.mxu0 0
    %245 = vmatprep.subr.bf16.mxu0 0
    %246 = vmatpush1.bf16.msra.mxu0 0
    %247 = vmatprep.subr.bf16.mxu0 0
    %248 = vmatpush1.bf16.msra.mxu0 0
    %249 = vmatprep.mubr.bf16.mxu0 0
    %250 = vmatmul.mubr.bf16.gmra.mrb[0].mxu0 %v153
    %v251 = vpop.f32.mrb[0].mxu0
    %v252 = vadd.f32 %v119, %v251
    %v253 = vpop.f32.mrb[0].mxu0
    %v254 = vpop.f32.mrb[0].mxu0
    %v255 = vadd.f32 %v119, %v254
    %v256 = vpop.f32.mrb[0].mxu0
    %257 = vmatprep.mubr.bf16.mxu0 0
    %258 = vmatmul.mubr.bf16.gmra.mrb[0].mxu0 %v154
    %v259 = vpop.f32.mrb[0].mxu0
    %v260 = vadd.f32 %v119, %v259
    %v261 = vpop.f32.mrb[0].mxu0
    %v262 = vpop.f32.mrb[0].mxu0
    %v263 = vadd.f32 %v119, %v262
    %v264 = vpop.f32.mrb[0].mxu0
    %265 = vmatprep.mubr.bf16.mxu0 0
    %266 = vmatmul.mubr.bf16.gmra.mrb[0].mxu0 %v155
    %v267 = vpop.f32.mrb[0].mxu0
    %v268 = vadd.f32 %v119, %v267
    %v269 = vpop.f32.mrb[0].mxu0
    %v270 = vpop.f32.mrb[0].mxu0
    %v271 = vadd.f32 %v119, %v270
    %v272 = vpop.f32.mrb[0].mxu0
    %273 = vmatprep.mubr.bf16.mxu0 0
    %274 = vmatmul.mubr.bf16.gmra.mrb[0].mxu0 %v156
    %v275 = vpop.f32.mrb[0].mxu0
    %v276 = vadd.f32 %v119, %v275
    %v277 = vpop.f32.mrb[0].mxu0
    %v278 = vpop.f32.mrb[0].mxu0
    %v279 = vadd.f32 %v119, %v278
    %v280 = vpop.f32.mrb[0].mxu0
    %281 = vmatprep.mubr.bf16.mxu0 0
    %282 = vmatmul.mubr.bf16.gmra.mrb[0].mxu0 %v157
    %v283 = vpop.f32.mrb[0].mxu0
    %v284 = vadd.f32 %v119, %v283
    %v285 = vpop.f32.mrb[0].mxu0
    %v286 = vpop.f32.mrb[0].mxu0
    %v287 = vadd.f32 %v119, %v286
    %v288 = vpop.f32.mrb[0].mxu0
    %289 = vmatprep.mubr.bf16.mxu0 0
    %290 = vmatmul.mubr.bf16.gmra.mrb[0].mxu0 %v158
    %v291 = vpop.f32.mrb[0].mxu0
    %v292 = vadd.f32 %v119, %v291
    %v293 = vpop.f32.mrb[0].mxu0
    %v294 = vpop.f32.mrb[0].mxu0
    %v295 = vadd.f32 %v119, %v294
    %v296 = vpop.f32.mrb[0].mxu0
    %297 = vmatprep.mubr.bf16.mxu0 0
    %298 = vmatmul.mubr.bf16.gmra.mrb[0].mxu0 %v159
    %v299 = vpop.f32.mrb[0].mxu0
    %v300 = vadd.f32 %v119, %v299
    %v301 = vpop.f32.mrb[0].mxu0
    %v302 = vpop.f32.mrb[0].mxu0
    %v303 = vadd.f32 %v119, %v302
    %v304 = vpop.f32.mrb[0].mxu0
    %305 = vmatprep.mubr.bf16.mxu0 0
    %306 = vmatmul.mubr.bf16.gmra.mrb[0].mxu0 %v160
    %v307 = vpop.f32.mrb[0].mxu0
    %v308 = vadd.f32 %v119, %v307
    %v309 = vpop.f32.mrb[0].mxu0
    %v310 = vpop.f32.mrb[0].mxu0
    %v311 = vadd.f32 %v119, %v310
    %v312 = vpop.f32.mrb[0].mxu0
    %313 = vdwg.mxu0
    %vm314 = vcmp.ge.f32.partialorder %v252, 0.0
    %vm315 = vcmp.ge.f32.partialorder %v255, 0.0
    %vm316 = vcmp.ge.f32.partialorder %v260, 0.0
    %vm317 = vcmp.ge.f32.partialorder %v263, 0.0
    %vm318 = vcmp.ge.f32.partialorder %v268, 0.0
    %vm319 = vcmp.ge.f32.partialorder %v271, 0.0
    %vm320 = vcmp.ge.f32.partialorder %v276, 0.0
    %vm321 = vcmp.ge.f32.partialorder %v279, 0.0
    %vm322 = vcmp.ge.f32.partialorder %v284, 0.0
    %vm323 = vcmp.ge.f32.partialorder %v287, 0.0
    %vm324 = vcmp.ge.f32.partialorder %v292, 0.0
    %vm325 = vcmp.ge.f32.partialorder %v295, 0.0
    %vm326 = vcmp.ge.f32.partialorder %v300, 0.0
    %vm327 = vcmp.ge.f32.partialorder %v303, 0.0
    %vm328 = vcmp.ge.f32.partialorder %v308, 0.0
    %vm329 = vcmp.ge.f32.partialorder %v311, 0.0
    %v330 = vmul.f32 %v252, 0.2
    %v331 = vmul.f32 %v255, 0.2
    %v332 = vmul.f32 %v260, 0.2
    %v333 = vmul.f32 %v263, 0.2
    %v334 = vmul.f32 %v268, 0.2
    %v335 = vmul.f32 %v271, 0.2
    %v336 = vmul.f32 %v276, 0.2
    %v337 = vmul.f32 %v279, 0.2
    %v338 = vmul.f32 %v284, 0.2
    %v339 = vmul.f32 %v287, 0.2
    %v340 = vmul.f32 %v292, 0.2
    %v341 = vmul.f32 %v295, 0.2
    %v342 = vmul.f32 %v300, 0.2
    %v343 = vmul.f32 %v303, 0.2
    %v344 = vmul.f32 %v308, 0.2
    %v345 = vmul.f32 %v311, 0.2
    %v346 = vsel %vm314, %v252, %v330
    %v347 = vsel %vm315, %v255, %v331
    %v348 = vsel %vm316, %v260, %v332
    %v349 = vsel %vm317, %v263, %v333
    %v350 = vsel %vm318, %v268, %v334
    %v351 = vsel %vm319, %v271, %v335
    %v352 = vsel %vm320, %v276, %v336
    %v353 = vsel %vm321, %v279, %v337
    %v354 = vsel %vm322, %v284, %v338
    %v355 = vsel %vm323, %v287, %v339
    %v356 = vsel %vm324, %v292, %v340
    %v357 = vsel %vm325, %v295, %v341
    %v358 = vsel %vm326, %v300, %v342
    %v359 = vsel %vm327, %v303, %v343
    %v360 = vsel %vm328, %v308, %v344
    %v361 = vsel %vm329, %v311, %v345
    %v362 = vpack.c.bf16 %v347, %v346
    %v363 = vpack.c.bf16 %v349, %v348
    %v364 = vpack.c.bf16 %v351, %v350
    %v365 = vpack.c.bf16 %v353, %v352
    %v366 = vpack.c.bf16 %v355, %v354
    %v367 = vpack.c.bf16 %v357, %v356
    %v368 = vpack.c.bf16 %v359, %v358
    %v369 = vpack.c.bf16 %v361, %v360
    %v370 = vld [vmem:[%s5] sm:$0x1]
    %v372 = vlaneseq
    %v373 = vshrl.u32 %v372, 7
    %v374 = vsub.s32 0, %v373
    %v375 = vrot.slane %v370, %v374
    %v377 = vadd.f32 %v375, 0.0
    %v378 = vld [vmem:[#allocation6] sm:$0xf]
    %v379 = vld [vmem:[#allocation6 + $0x4] sm:$0xf]
    %v380 = vld [vmem:[#allocation6 + $0x8] sm:$0xf]
    %v381 = vld [vmem:[#allocation6 + $0xc] sm:$0xf]
    %v386 = vunpack.c.l.b16 %v378
    %v387 = vunpack.c.l.b16 %v379
    %v388 = vunpack.c.l.b16 %v380
    %v389 = vunpack.c.l.b16 %v381
    %v390 = vpack.c.b16 %v387, %v386
    %v391 = vpack.c.b16 %v389, %v388
    %394 = vmatprep.subr.bf16.mxu0 0
    %395 = vmatpush1.bf16.msra.mxu0 %v362
    %396 = vmatprep.subr.bf16.mxu0 0
    %397 = vmatpush1.bf16.msra.mxu0 %v363
    %398 = vmatprep.subr.bf16.mxu0 0
    %399 = vmatpush1.bf16.msra.mxu0 %v364
    %400 = vmatprep.subr.bf16.mxu0 0
    %401 = vmatpush1.bf16.msra.mxu0 %v365
    %402 = vmatprep.subr.bf16.mxu0 0
    %403 = vmatpush1.bf16.msra.mxu0 %v366
    %404 = vmatprep.subr.bf16.mxu0 0
    %405 = vmatpush1.bf16.msra.mxu0 %v367
    %406 = vmatprep.subr.bf16.mxu0 0
    %407 = vmatpush1.bf16.msra.mxu0 %v368
    %408 = vmatprep.subr.bf16.mxu0 0
    %409 = vmatpush1.bf16.msra.mxu0 %v369
    %410 = vmatprep.subr.bf16.mxu0 0
    %411 = vmatpush1.bf16.msra.mxu0 0
    %412 = vmatprep.subr.bf16.mxu0 0
    %413 = vmatpush1.bf16.msra.mxu0 0
    %414 = vmatprep.subr.bf16.mxu0 0
    %415 = vmatpush1.bf16.msra.mxu0 0
    %416 = vmatprep.subr.bf16.mxu0 0
    %417 = vmatpush1.bf16.msra.mxu0 0
    %418 = vmatprep.subr.bf16.mxu0 0
    %419 = vmatpush1.bf16.msra.mxu0 0
    %420 = vmatprep.subr.bf16.mxu0 0
    %421 = vmatpush1.bf16.msra.mxu0 0
    %422 = vmatprep.subr.bf16.mxu0 0
    %423 = vmatpush1.bf16.msra.mxu0 0
    %424 = vmatprep.subr.bf16.mxu0 0
    %425 = vmatpush1.bf16.msra.mxu0 0
    %426 = vmatprep.mubr.bf16.mxu0 0
    %427 = vmatmul.mubr.bf16.gmra.mrb[0].mxu0 %v390
    %v428 = vpop.f32.mrb[0].mxu0
    %v429 = vadd.f32 0.0, %v428
    %v430 = vpop.f32.mrb[0].mxu0
    %v431 = vpop.f32.mrb[0].mxu0
    %v432 = vadd.f32 0.0, %v431
    %v433 = vpop.f32.mrb[0].mxu0
    %434 = vmatprep.mubr.bf16.mxu0 0
    %435 = vmatmul.mubr.bf16.gmra.mrb[0].mxu0 %v391
    %v436 = vpop.f32.mrb[0].mxu0
    %v437 = vadd.f32 0.0, %v436
    %v438 = vpop.f32.mrb[0].mxu0
    %v439 = vpop.f32.mrb[0].mxu0
    %v440 = vadd.f32 0.0, %v439
    %v441 = vpop.f32.mrb[0].mxu0
    %442 = vdwg.mxu0
    %v443 = vpack.c.bf16 %v432, %v429
    %v444 = vpack.c.bf16 %v440, %v437
    %v445 = vld [vmem:[#allocation7] sm:$0xf]
    %v446 = vld [vmem:[#allocation7 + $0x4] sm:$0xf]
    %v447 = vld [vmem:[#allocation7 + $0x8] sm:$0xf]
    %v448 = vld [vmem:[#allocation7 + $0xc] sm:$0xf]
    %v449 = vld [vmem:[#allocation7 + $0x10] sm:$0xf]
    %v450 = vld [vmem:[#allocation7 + $0x14] sm:$0xf]
    %v451 = vld [vmem:[#allocation7 + $0x18] sm:$0xf]
    %v452 = vld [vmem:[#allocation7 + $0x1c] sm:$0xf]
    %v453 = vld [vmem:[#allocation7 + $0x20] sm:$0xf]
    %v454 = vld [vmem:[#allocation7 + $0x24] sm:$0xf]
    %v455 = vld [vmem:[#allocation7 + $0x28] sm:$0xf]
    %v456 = vld [vmem:[#allocation7 + $0x2c] sm:$0xf]
    %v457 = vld [vmem:[#allocation7 + $0x30] sm:$0xf]
    %v458 = vld [vmem:[#allocation7 + $0x34] sm:$0xf]
    %v459 = vld [vmem:[#allocation7 + $0x38] sm:$0xf]
    %v460 = vld [vmem:[#allocation7 + $0x3c] sm:$0xf]
    %v477 = vunpack.c.l.b16 %v445
    %v478 = vunpack.c.l.b16 %v446
    %v479 = vunpack.c.l.b16 %v447
    %v480 = vunpack.c.l.b16 %v448
    %v481 = vunpack.c.l.b16 %v449
    %v482 = vunpack.c.l.b16 %v450
    %v483 = vunpack.c.l.b16 %v451
    %v484 = vunpack.c.l.b16 %v452
    %v485 = vunpack.c.l.b16 %v453
    %v486 = vunpack.c.l.b16 %v454
    %v487 = vunpack.c.l.b16 %v455
    %v488 = vunpack.c.l.b16 %v456
    %v489 = vunpack.c.l.b16 %v457
    %v490 = vunpack.c.l.b16 %v458
    %v491 = vunpack.c.l.b16 %v459
    %v492 = vunpack.c.l.b16 %v460
    %v493 = vpack.c.b16 %v478, %v477
    %v494 = vpack.c.b16 %v480, %v479
    %v495 = vpack.c.b16 %v482, %v481
    %v496 = vpack.c.b16 %v484, %v483
    %v497 = vpack.c.b16 %v486, %v485
    %v498 = vpack.c.b16 %v488, %v487
    %v499 = vpack.c.b16 %v490, %v489
    %v500 = vpack.c.b16 %v492, %v491
    %509 = vmatprep.subr.bf16.mxu0 0
    %510 = vmatpush1.bf16.msra.mxu0 %v493
    %511 = vmatprep.subr.bf16.mxu0 0
    %512 = vmatpush1.bf16.msra.mxu0 %v494
    %513 = vmatprep.subr.bf16.mxu0 0
    %514 = vmatpush1.bf16.msra.mxu0 %v495
    %515 = vmatprep.subr.bf16.mxu0 0
    %516 = vmatpush1.bf16.msra.mxu0 %v496
    %517 = vmatprep.subr.bf16.mxu0 0
    %518 = vmatpush1.bf16.msra.mxu0 %v497
    %519 = vmatprep.subr.bf16.mxu0 0
    %520 = vmatpush1.bf16.msra.mxu0 %v498
    %521 = vmatprep.subr.bf16.mxu0 0
    %522 = vmatpush1.bf16.msra.mxu0 %v499
    %523 = vmatprep.subr.bf16.mxu0 0
    %524 = vmatpush1.bf16.msra.mxu0 %v500
    %525 = vmatprep.subr.bf16.mxu0 0
    %526 = vmatpush1.bf16.msra.mxu0 0
    %527 = vmatprep.subr.bf16.mxu0 0
    %528 = vmatpush1.bf16.msra.mxu0 0
    %529 = vmatprep.subr.bf16.mxu0 0
    %530 = vmatpush1.bf16.msra.mxu0 0
    %531 = vmatprep.subr.bf16.mxu0 0
    %532 = vmatpush1.bf16.msra.mxu0 0
    %533 = vmatprep.subr.bf16.mxu0 0
    %534 = vmatpush1.bf16.msra.mxu0 0
    %535 = vmatprep.subr.bf16.mxu0 0
    %536 = vmatpush1.bf16.msra.mxu0 0
    %537 = vmatprep.subr.bf16.mxu0 0
    %538 = vmatpush1.bf16.msra.mxu0 0
    %539 = vmatprep.subr.bf16.mxu0 0
    %540 = vmatpush1.bf16.msra.mxu0 0
    %541 = vmatprep.mubr.bf16.mxu0 0
    %542 = vmatmul.mubr.bf16.gmra.mrb[0].mxu0 %v443
    %v543 = vpop.f32.mrb[0].mxu0
    %v544 = vadd.f32 0.0, %v543
    %v545 = vpop.f32.mrb[0].mxu0
    %v546 = vpop.f32.mrb[0].mxu0
    %v547 = vadd.f32 0.0, %v546
    %v548 = vpop.f32.mrb[0].mxu0
    %549 = vmatprep.mubr.bf16.mxu0 0
    %550 = vmatmul.mubr.bf16.gmra.mrb[0].mxu0 %v444
    %v551 = vpop.f32.mrb[0].mxu0
    %v552 = vadd.f32 0.0, %v551
    %v553 = vpop.f32.mrb[0].mxu0
    %v554 = vpop.f32.mrb[0].mxu0
    %v555 = vadd.f32 0.0, %v554
    %v556 = vpop.f32.mrb[0].mxu0
    %557 = vdwg.mxu0
    %v558 = vadd.f32 %v377, %v544
    %v559 = vadd.f32 %v377, %v547
    %v560 = vadd.f32 %v377, %v552
    %v561 = vadd.f32 %v377, %v555
    %s562 = scalar_lea.vmem [#allocation6], 16
    %v563 = vld [vmem:[%s562] sm:$0xf]
    %v564 = vld [vmem:[%s562 + $0x4] sm:$0xf]
    %v565 = vld [vmem:[%s562 + $0x8] sm:$0xf]
    %v566 = vld [vmem:[%s562 + $0xc] sm:$0xf]
    %v571 = vunpack.c.l.b16 %v563
    %v572 = vunpack.c.l.b16 %v564
    %v573 = vunpack.c.l.b16 %v565
    %v574 = vunpack.c.l.b16 %v566
    %v575 = vpack.c.b16 %v572, %v571
    %v576 = vpack.c.b16 %v574, %v573
    %579 = vmatprep.subr.bf16.mxu0 0
    %580 = vmatpush1.bf16.msra.mxu0 %v362
    %581 = vmatprep.subr.bf16.mxu0 0
    %582 = vmatpush1.bf16.msra.mxu0 %v363
    %583 = vmatprep.subr.bf16.mxu0 0
    %584 = vmatpush1.bf16.msra.mxu0 %v364
    %585 = vmatprep.subr.bf16.mxu0 0
    %586 = vmatpush1.bf16.msra.mxu0 %v365
    %587 = vmatprep.subr.bf16.mxu0 0
    %588 = vmatpush1.bf16.msra.mxu0 %v366
    %589 = vmatprep.subr.bf16.mxu0 0
    %590 = vmatpush1.bf16.msra.mxu0 %v367
    %591 = vmatprep.subr.bf16.mxu0 0
    %592 = vmatpush1.bf16.msra.mxu0 %v368
    %593 = vmatprep.subr.bf16.mxu0 0
    %594 = vmatpush1.bf16.msra.mxu0 %v369
    %595 = vmatprep.subr.bf16.mxu0 0
    %596 = vmatpush1.bf16.msra.mxu0 0
    %597 = vmatprep.subr.bf16.mxu0 0
    %598 = vmatpush1.bf16.msra.mxu0 0
    %599 = vmatprep.subr.bf16.mxu0 0
    %600 = vmatpush1.bf16.msra.mxu0 0
    %601 = vmatprep.subr.bf16.mxu0 0
    %602 = vmatpush1.bf16.msra.mxu0 0
    %603 = vmatprep.subr.bf16.mxu0 0
    %604 = vmatpush1.bf16.msra.mxu0 0
    %605 = vmatprep.subr.bf16.mxu0 0
    %606 = vmatpush1.bf16.msra.mxu0 0
    %607 = vmatprep.subr.bf16.mxu0 0
    %608 = vmatpush1.bf16.msra.mxu0 0
    %609 = vmatprep.subr.bf16.mxu0 0
    %610 = vmatpush1.bf16.msra.mxu0 0
    %611 = vmatprep.mubr.bf16.mxu0 0
    %612 = vmatmul.mubr.bf16.gmra.mrb[0].mxu0 %v575
    %v613 = vpop.f32.mrb[0].mxu0
    %v614 = vadd.f32 0.0, %v613
    %v615 = vpop.f32.mrb[0].mxu0
    %v616 = vpop.f32.mrb[0].mxu0
    %v617 = vadd.f32 0.0, %v616
    %v618 = vpop.f32.mrb[0].mxu0
    %619 = vmatprep.mubr.bf16.mxu0 0
    %620 = vmatmul.mubr.bf16.gmra.mrb[0].mxu0 %v576
    %v621 = vpop.f32.mrb[0].mxu0
    %v622 = vadd.f32 0.0, %v621
    %v623 = vpop.f32.mrb[0].mxu0
    %v624 = vpop.f32.mrb[0].mxu0
    %v625 = vadd.f32 0.0, %v624
    %v626 = vpop.f32.mrb[0].mxu0
    %627 = vdwg.mxu0
    %v628 = vpack.c.bf16 %v617, %v614
    %v629 = vpack.c.bf16 %v625, %v622
    %s630 = scalar_lea.vmem [#allocation7], 64
    %v631 = vld [vmem:[%s630] sm:$0xf]
    %v632 = vld [vmem:[%s630 + $0x4] sm:$0xf]
    %v633 = vld [vmem:[%s630 + $0x8] sm:$0xf]
    %v634 = vld [vmem:[%s630 + $0xc] sm:$0xf]
    %v635 = vld [vmem:[%s630 + $0x10] sm:$0xf]
    %v636 = vld [vmem:[%s630 + $0x14] sm:$0xf]
    %v637 = vld [vmem:[%s630 + $0x18] sm:$0xf]
    %v638 = vld [vmem:[%s630 + $0x1c] sm:$0xf]
    %v639 = vld [vmem:[%s630 + $0x20] sm:$0xf]
    %v640 = vld [vmem:[%s630 + $0x24] sm:$0xf]
    %v641 = vld [vmem:[%s630 + $0x28] sm:$0xf]
    %v642 = vld [vmem:[%s630 + $0x2c] sm:$0xf]
    %v643 = vld [vmem:[%s630 + $0x30] sm:$0xf]
    %v644 = vld [vmem:[%s630 + $0x34] sm:$0xf]
    %v645 = vld [vmem:[%s630 + $0x38] sm:$0xf]
    %v646 = vld [vmem:[%s630 + $0x3c] sm:$0xf]
    %v663 = vunpack.c.l.b16 %v631
    %v664 = vunpack.c.l.b16 %v632
    %v665 = vunpack.c.l.b16 %v633
    %v666 = vunpack.c.l.b16 %v634
    %v667 = vunpack.c.l.b16 %v635
    %v668 = vunpack.c.l.b16 %v636
    %v669 = vunpack.c.l.b16 %v637
    %v670 = vunpack.c.l.b16 %v638
    %v671 = vunpack.c.l.b16 %v639
    %v672 = vunpack.c.l.b16 %v640
    %v673 = vunpack.c.l.b16 %v641
    %v674 = vunpack.c.l.b16 %v642
    %v675 = vunpack.c.l.b16 %v643
    %v676 = vunpack.c.l.b16 %v644
    %v677 = vunpack.c.l.b16 %v645
    %v678 = vunpack.c.l.b16 %v646
    %v679 = vpack.c.b16 %v664, %v663
    %v680 = vpack.c.b16 %v666, %v665
    %v681 = vpack.c.b16 %v668, %v667
    %v682 = vpack.c.b16 %v670, %v669
    %v683 = vpack.c.b16 %v672, %v671
    %v684 = vpack.c.b16 %v674, %v673
    %v685 = vpack.c.b16 %v676, %v675
    %v686 = vpack.c.b16 %v678, %v677
    %695 = vmatprep.subr.bf16.mxu0 0
    %696 = vmatpush1.bf16.msra.mxu0 %v679
    %697 = vmatprep.subr.bf16.mxu0 0
    %698 = vmatpush1.bf16.msra.mxu0 %v680
    %699 = vmatprep.subr.bf16.mxu0 0
    %700 = vmatpush1.bf16.msra.mxu0 %v681
    %701 = vmatprep.subr.bf16.mxu0 0
    %702 = vmatpush1.bf16.msra.mxu0 %v682
    %703 = vmatprep.subr.bf16.mxu0 0
    %704 = vmatpush1.bf16.msra.mxu0 %v683
    %705 = vmatprep.subr.bf16.mxu0 0
    %706 = vmatpush1.bf16.msra.mxu0 %v684
    %707 = vmatprep.subr.bf16.mxu0 0
    %708 = vmatpush1.bf16.msra.mxu0 %v685
    %709 = vmatprep.subr.bf16.mxu0 0
    %710 = vmatpush1.bf16.msra.mxu0 %v686
    %711 = vmatprep.subr.bf16.mxu0 0
    %712 = vmatpush1.bf16.msra.mxu0 0
    %713 = vmatprep.subr.bf16.mxu0 0
    %714 = vmatpush1.bf16.msra.mxu0 0
    %715 = vmatprep.subr.bf16.mxu0 0
    %716 = vmatpush1.bf16.msra.mxu0 0
    %717 = vmatprep.subr.bf16.mxu0 0
    %718 = vmatpush1.bf16.msra.mxu0 0
    %719 = vmatprep.subr.bf16.mxu0 0
    %720 = vmatpush1.bf16.msra.mxu0 0
    %721 = vmatprep.subr.bf16.mxu0 0
    %722 = vmatpush1.bf16.msra.mxu0 0
    %723 = vmatprep.subr.bf16.mxu0 0
    %724 = vmatpush1.bf16.msra.mxu0 0
    %725 = vmatprep.subr.bf16.mxu0 0
    %726 = vmatpush1.bf16.msra.mxu0 0
    %727 = vmatprep.mubr.bf16.mxu0 0
    %728 = vmatmul.mubr.bf16.gmra.mrb[0].mxu0 %v628
    %v729 = vpop.f32.mrb[0].mxu0
    %v730 = vadd.f32 0.0, %v729
    %v731 = vpop.f32.mrb[0].mxu0
    %v732 = vpop.f32.mrb[0].mxu0
    %v733 = vadd.f32 0.0, %v732
    %v734 = vpop.f32.mrb[0].mxu0
    %735 = vmatprep.mubr.bf16.mxu0 0
    %736 = vmatmul.mubr.bf16.gmra.mrb[0].mxu0 %v629
    %v737 = vpop.f32.mrb[0].mxu0
    %v738 = vadd.f32 0.0, %v737
    %v739 = vpop.f32.mrb[0].mxu0
    %v740 = vpop.f32.mrb[0].mxu0
    %v741 = vadd.f32 0.0, %v740
    %v742 = vpop.f32.mrb[0].mxu0
    %743 = vdwg.mxu0
    %v744 = vadd.f32 %v558, %v730
    %v745 = vadd.f32 %v559, %v733
    %v746 = vadd.f32 %v560, %v738
    %v747 = vadd.f32 %v561, %v741
    %s748 = scalar_lea.vmem [#allocation6], 32
    %v749 = vld [vmem:[%s748] sm:$0xf]
    %v750 = vld [vmem:[%s748 + $0x4] sm:$0xf]
    %v751 = vld [vmem:[%s748 + $0x8] sm:$0xf]
    %v752 = vld [vmem:[%s748 + $0xc] sm:$0xf]
    %v757 = vunpack.c.l.b16 %v749
    %v758 = vunpack.c.l.b16 %v750
    %v759 = vunpack.c.l.b16 %v751
    %v760 = vunpack.c.l.b16 %v752
    %v761 = vpack.c.b16 %v758, %v757
    %v762 = vpack.c.b16 %v760, %v759
    %765 = vmatprep.subr.bf16.mxu0 0
    %766 = vmatpush1.bf16.msra.mxu0 %v362
    %767 = vmatprep.subr.bf16.mxu0 0
    %768 = vmatpush1.bf16.msra.mxu0 %v363
    %769 = vmatprep.subr.bf16.mxu0 0
    %770 = vmatpush1.bf16.msra.mxu0 %v364
    %771 = vmatprep.subr.bf16.mxu0 0
    %772 = vmatpush1.bf16.msra.mxu0 %v365
    %773 = vmatprep.subr.bf16.mxu0 0
    %774 = vmatpush1.bf16.msra.mxu0 %v366
    %775 = vmatprep.subr.bf16.mxu0 0
    %776 = vmatpush1.bf16.msra.mxu0 %v367
    %777 = vmatprep.subr.bf16.mxu0 0
    %778 = vmatpush1.bf16.msra.mxu0 %v368
    %779 = vmatprep.subr.bf16.mxu0 0
    %780 = vmatpush1.bf16.msra.mxu0 %v369
    %781 = vmatprep.subr.bf16.mxu0 0
    %782 = vmatpush1.bf16.msra.mxu0 0
    %783 = vmatprep.subr.bf16.mxu0 0
    %784 = vmatpush1.bf16.msra.mxu0 0
    %785 = vmatprep.subr.bf16.mxu0 0
    %786 = vmatpush1.bf16.msra.mxu0 0
    %787 = vmatprep.subr.bf16.mxu0 0
    %788 = vmatpush1.bf16.msra.mxu0 0
    %789 = vmatprep.subr.bf16.mxu0 0
    %790 = vmatpush1.bf16.msra.mxu0 0
    %791 = vmatprep.subr.bf16.mxu0 0
    %792 = vmatpush1.bf16.msra.mxu0 0
    %793 = vmatprep.subr.bf16.mxu0 0
    %794 = vmatpush1.bf16.msra.mxu0 0
    %795 = vmatprep.subr.bf16.mxu0 0
    %796 = vmatpush1.bf16.msra.mxu0 0
    %797 = vmatprep.mubr.bf16.mxu0 0
    %798 = vmatmul.mubr.bf16.gmra.mrb[0].mxu0 %v761
    %v799 = vpop.f32.mrb[0].mxu0
    %v800 = vadd.f32 0.0, %v799
    %v801 = vpop.f32.mrb[0].mxu0
    %v802 = vpop.f32.mrb[0].mxu0
    %v803 = vadd.f32 0.0, %v802
    %v804 = vpop.f32.mrb[0].mxu0
    %805 = vmatprep.mubr.bf16.mxu0 0
    %806 = vmatmul.mubr.bf16.gmra.mrb[0].mxu0 %v762
    %v807 = vpop.f32.mrb[0].mxu0
    %v808 = vadd.f32 0.0, %v807
    %v809 = vpop.f32.mrb[0].mxu0
    %v810 = vpop.f32.mrb[0].mxu0
    %v811 = vadd.f32 0.0, %v810
    %v812 = vpop.f32.mrb[0].mxu0
    %813 = vdwg.mxu0
    %v814 = vpack.c.bf16 %v803, %v800
    %v815 = vpack.c.bf16 %v811, %v808
    %s816 = scalar_lea.vmem [#allocation7], 128
    %v817 = vld [vmem:[%s816] sm:$0xf]
    %v818 = vld [vmem:[%s816 + $0x4] sm:$0xf]
    %v819 = vld [vmem:[%s816 + $0x8] sm:$0xf]
    %v820 = vld [vmem:[%s816 + $0xc] sm:$0xf]
    %v821 = vld [vmem:[%s816 + $0x10] sm:$0xf]
    %v822 = vld [vmem:[%s816 + $0x14] sm:$0xf]
    %v823 = vld [vmem:[%s816 + $0x18] sm:$0xf]
    %v824 = vld [vmem:[%s816 + $0x1c] sm:$0xf]
    %v825 = vld [vmem:[%s816 + $0x20] sm:$0xf]
    %v826 = vld [vmem:[%s816 + $0x24] sm:$0xf]
    %v827 = vld [vmem:[%s816 + $0x28] sm:$0xf]
    %v828 = vld [vmem:[%s816 + $0x2c] sm:$0xf]
    %v829 = vld [vmem:[%s816 + $0x30] sm:$0xf]
    %v830 = vld [vmem:[%s816 + $0x34] sm:$0xf]
    %v831 = vld [vmem:[%s816 + $0x38] sm:$0xf]
    %v832 = vld [vmem:[%s816 + $0x3c] sm:$0xf]
    %v849 = vunpack.c.l.b16 %v817
    %v850 = vunpack.c.l.b16 %v818
    %v851 = vunpack.c.l.b16 %v819
    %v852 = vunpack.c.l.b16 %v820
    %v853 = vunpack.c.l.b16 %v821
    %v854 = vunpack.c.l.b16 %v822
    %v855 = vunpack.c.l.b16 %v823
    %v856 = vunpack.c.l.b16 %v824
    %v857 = vunpack.c.l.b16 %v825
    %v858 = vunpack.c.l.b16 %v826
    %v859 = vunpack.c.l.b16 %v827
    %v860 = vunpack.c.l.b16 %v828
    %v861 = vunpack.c.l.b16 %v829
    %v862 = vunpack.c.l.b16 %v830
    %v863 = vunpack.c.l.b16 %v831
    %v864 = vunpack.c.l.b16 %v832
    %v865 = vpack.c.b16 %v850, %v849
    %v866 = vpack.c.b16 %v852, %v851
    %v867 = vpack.c.b16 %v854, %v853
    %v868 = vpack.c.b16 %v856, %v855
    %v869 = vpack.c.b16 %v858, %v857
    %v870 = vpack.c.b16 %v860, %v859
    %v871 = vpack.c.b16 %v862, %v861
    %v872 = vpack.c.b16 %v864, %v863
    %881 = vmatprep.subr.bf16.mxu0 0
    %882 = vmatpush1.bf16.msra.mxu0 %v865
    %883 = vmatprep.subr.bf16.mxu0 0
    %884 = vmatpush1.bf16.msra.mxu0 %v866
    %885 = vmatprep.subr.bf16.mxu0 0
    %886 = vmatpush1.bf16.msra.mxu0 %v867
    %887 = vmatprep.subr.bf16.mxu0 0
    %888 = vmatpush1.bf16.msra.mxu0 %v868
    %889 = vmatprep.subr.bf16.mxu0 0
    %890 = vmatpush1.bf16.msra.mxu0 %v869
    %891 = vmatprep.subr.bf16.mxu0 0
    %892 = vmatpush1.bf16.msra.mxu0 %v870
    %893 = vmatprep.subr.bf16.mxu0 0
    %894 = vmatpush1.bf16.msra.mxu0 %v871
    %895 = vmatprep.subr.bf16.mxu0 0
    %896 = vmatpush1.bf16.msra.mxu0 %v872
    %897 = vmatprep.subr.bf16.mxu0 0
    %898 = vmatpush1.bf16.msra.mxu0 0
    %899 = vmatprep.subr.bf16.mxu0 0
    %900 = vmatpush1.bf16.msra.mxu0 0
    %901 = vmatprep.subr.bf16.mxu0 0
    %902 = vmatpush1.bf16.msra.mxu0 0
    %903 = vmatprep.subr.bf16.mxu0 0
    %904 = vmatpush1.bf16.msra.mxu0 0
    %905 = vmatprep.subr.bf16.mxu0 0
    %906 = vmatpush1.bf16.msra.mxu0 0
    %907 = vmatprep.subr.bf16.mxu0 0
    %908 = vmatpush1.bf16.msra.mxu0 0
    %909 = vmatprep.subr.bf16.mxu0 0
    %910 = vmatpush1.bf16.msra.mxu0 0
    %911 = vmatprep.subr.bf16.mxu0 0
    %912 = vmatpush1.bf16.msra.mxu0 0
    %913 = vmatprep.mubr.bf16.mxu0 0
    %914 = vmatmul.mubr.bf16.gmra.mrb[0].mxu0 %v814
    %v915 = vpop.f32.mrb[0].mxu0
    %v916 = vadd.f32 0.0, %v915
    %v917 = vpop.f32.mrb[0].mxu0
    %v918 = vpop.f32.mrb[0].mxu0
    %v919 = vadd.f32 0.0, %v918
    %v920 = vpop.f32.mrb[0].mxu0
    %921 = vmatprep.mubr.bf16.mxu0 0
    %922 = vmatmul.mubr.bf16.gmra.mrb[0].mxu0 %v815
    %v923 = vpop.f32.mrb[0].mxu0
    %v924 = vadd.f32 0.0, %v923
    %v925 = vpop.f32.mrb[0].mxu0
    %v926 = vpop.f32.mrb[0].mxu0
    %v927 = vadd.f32 0.0, %v926
    %v928 = vpop.f32.mrb[0].mxu0
    %929 = vdwg.mxu0
    %v930 = vadd.f32 %v744, %v916
    %v931 = vadd.f32 %v745, %v919
    %v932 = vadd.f32 %v746, %v924
    %v933 = vadd.f32 %v747, %v927
    %s934 = scalar_lea.vmem [#allocation6], 48
    %v935 = vld [vmem:[%s934] sm:$0xf]
    %v936 = vld [vmem:[%s934 + $0x4] sm:$0xf]
    %v937 = vld [vmem:[%s934 + $0x8] sm:$0xf]
    %v938 = vld [vmem:[%s934 + $0xc] sm:$0xf]
    %v943 = vunpack.c.l.b16 %v935
    %v944 = vunpack.c.l.b16 %v936
    %v945 = vunpack.c.l.b16 %v937
    %v946 = vunpack.c.l.b16 %v938
    %v947 = vpack.c.b16 %v944, %v943
    %v948 = vpack.c.b16 %v946, %v945
    %951 = vmatprep.subr.bf16.mxu0 0
    %952 = vmatpush1.bf16.msra.mxu0 %v362
    %953 = vmatprep.subr.bf16.mxu0 0
    %954 = vmatpush1.bf16.msra.mxu0 %v363
    %955 = vmatprep.subr.bf16.mxu0 0
    %956 = vmatpush1.bf16.msra.mxu0 %v364
    %957 = vmatprep.subr.bf16.mxu0 0
    %958 = vmatpush1.bf16.msra.mxu0 %v365
    %959 = vmatprep.subr.bf16.mxu0 0
    %960 = vmatpush1.bf16.msra.mxu0 %v366
    %961 = vmatprep.subr.bf16.mxu0 0
    %962 = vmatpush1.bf16.msra.mxu0 %v367
    %963 = vmatprep.subr.bf16.mxu0 0
    %964 = vmatpush1.bf16.msra.mxu0 %v368
    %965 = vmatprep.subr.bf16.mxu0 0
    %966 = vmatpush1.bf16.msra.mxu0 %v369
    %967 = vmatprep.subr.bf16.mxu0 0
    %968 = vmatpush1.bf16.msra.mxu0 0
    %969 = vmatprep.subr.bf16.mxu0 0
    %970 = vmatpush1.bf16.msra.mxu0 0
    %971 = vmatprep.subr.bf16.mxu0 0
    %972 = vmatpush1.bf16.msra.mxu0 0
    %973 = vmatprep.subr.bf16.mxu0 0
    %974 = vmatpush1.bf16.msra.mxu0 0
    %975 = vmatprep.subr.bf16.mxu0 0
    %976 = vmatpush1.bf16.msra.mxu0 0
    %977 = vmatprep.subr.bf16.mxu0 0
    %978 = vmatpush1.bf16.msra.mxu0 0
    %979 = vmatprep.subr.bf16.mxu0 0
    %980 = vmatpush1.bf16.msra.mxu0 0
    %981 = vmatprep.subr.bf16.mxu0 0
    %982 = vmatpush1.bf16.msra.mxu0 0
    %983 = vmatprep.mubr.bf16.mxu0 0
    %984 = vmatmul.mubr.bf16.gmra.mrb[0].mxu0 %v947
    %v985 = vpop.f32.mrb[0].mxu0
    %v986 = vadd.f32 0.0, %v985
    %v987 = vpop.f32.mrb[0].mxu0
    %v988 = vpop.f32.mrb[0].mxu0
    %v989 = vadd.f32 0.0, %v988
    %v990 = vpop.f32.mrb[0].mxu0
    %991 = vmatprep.mubr.bf16.mxu0 0
    %992 = vmatmul.mubr.bf16.gmra.mrb[0].mxu0 %v948
    %v993 = vpop.f32.mrb[0].mxu0
    %v994 = vadd.f32 0.0, %v993
    %v995 = vpop.f32.mrb[0].mxu0
    %v996 = vpop.f32.mrb[0].mxu0
    %v997 = vadd.f32 0.0, %v996
    %v998 = vpop.f32.mrb[0].mxu0
    %999 = vdwg.mxu0
    %v1000 = vpack.c.bf16 %v989, %v986
    %v1001 = vpack.c.bf16 %v997, %v994
    %s1002 = scalar_lea.vmem [#allocation7], 192
    %v1003 = vld [vmem:[%s1002] sm:$0xf]
    %v1004 = vld [vmem:[%s1002 + $0x4] sm:$0xf]
    %v1005 = vld [vmem:[%s1002 + $0x8] sm:$0xf]
    %v1006 = vld [vmem:[%s1002 + $0xc] sm:$0xf]
    %v1007 = vld [vmem:[%s1002 + $0x10] sm:$0xf]
    %v1008 = vld [vmem:[%s1002 + $0x14] sm:$0xf]
    %v1009 = vld [vmem:[%s1002 + $0x18] sm:$0xf]
    %v1010 = vld [vmem:[%s1002 + $0x1c] sm:$0xf]
    %v1011 = vld [vmem:[%s1002 + $0x20] sm:$0xf]
    %v1012 = vld [vmem:[%s1002 + $0x24] sm:$0xf]
    %v1013 = vld [vmem:[%s1002 + $0x28] sm:$0xf]
    %v1014 = vld [vmem:[%s1002 + $0x2c] sm:$0xf]
    %v1015 = vld [vmem:[%s1002 + $0x30] sm:$0xf]
    %v1016 = vld [vmem:[%s1002 + $0x34] sm:$0xf]
    %v1017 = vld [vmem:[%s1002 + $0x38] sm:$0xf]
    %v1018 = vld [vmem:[%s1002 + $0x3c] sm:$0xf]
    %v1035 = vunpack.c.l.b16 %v1003
    %v1036 = vunpack.c.l.b16 %v1004
    %v1037 = vunpack.c.l.b16 %v1005
    %v1038 = vunpack.c.l.b16 %v1006
    %v1039 = vunpack.c.l.b16 %v1007
    %v1040 = vunpack.c.l.b16 %v1008
    %v1041 = vunpack.c.l.b16 %v1009
    %v1042 = vunpack.c.l.b16 %v1010
    %v1043 = vunpack.c.l.b16 %v1011
    %v1044 = vunpack.c.l.b16 %v1012
    %v1045 = vunpack.c.l.b16 %v1013
    %v1046 = vunpack.c.l.b16 %v1014
    %v1047 = vunpack.c.l.b16 %v1015
    %v1048 = vunpack.c.l.b16 %v1016
    %v1049 = vunpack.c.l.b16 %v1017
    %v1050 = vunpack.c.l.b16 %v1018
    %v1051 = vpack.c.b16 %v1036, %v1035
    %v1052 = vpack.c.b16 %v1038, %v1037
    %v1053 = vpack.c.b16 %v1040, %v1039
    %v1054 = vpack.c.b16 %v1042, %v1041
    %v1055 = vpack.c.b16 %v1044, %v1043
    %v1056 = vpack.c.b16 %v1046, %v1045
    %v1057 = vpack.c.b16 %v1048, %v1047
    %v1058 = vpack.c.b16 %v1050, %v1049
    %1067 = vmatprep.subr.bf16.mxu0 0
    %1068 = vmatpush1.bf16.msra.mxu0 %v1051
    %1069 = vmatprep.subr.bf16.mxu0 0
    %1070 = vmatpush1.bf16.msra.mxu0 %v1052
    %1071 = vmatprep.subr.bf16.mxu0 0
    %1072 = vmatpush1.bf16.msra.mxu0 %v1053
    %1073 = vmatprep.subr.bf16.mxu0 0
    %1074 = vmatpush1.bf16.msra.mxu0 %v1054
    %1075 = vmatprep.subr.bf16.mxu0 0
    %1076 = vmatpush1.bf16.msra.mxu0 %v1055
    %1077 = vmatprep.subr.bf16.mxu0 0
    %1078 = vmatpush1.bf16.msra.mxu0 %v1056
    %1079 = vmatprep.subr.bf16.mxu0 0
    %1080 = vmatpush1.bf16.msra.mxu0 %v1057
    %1081 = vmatprep.subr.bf16.mxu0 0
    %1082 = vmatpush1.bf16.msra.mxu0 %v1058
    %1083 = vmatprep.subr.bf16.mxu0 0
    %1084 = vmatpush1.bf16.msra.mxu0 0
    %1085 = vmatprep.subr.bf16.mxu0 0
    %1086 = vmatpush1.bf16.msra.mxu0 0
    %1087 = vmatprep.subr.bf16.mxu0 0
    %1088 = vmatpush1.bf16.msra.mxu0 0
    %1089 = vmatprep.subr.bf16.mxu0 0
    %1090 = vmatpush1.bf16.msra.mxu0 0
    %1091 = vmatprep.subr.bf16.mxu0 0
    %1092 = vmatpush1.bf16.msra.mxu0 0
    %1093 = vmatprep.subr.bf16.mxu0 0
    %1094 = vmatpush1.bf16.msra.mxu0 0
    %1095 = vmatprep.subr.bf16.mxu0 0
    %1096 = vmatpush1.bf16.msra.mxu0 0
    %1097 = vmatprep.subr.bf16.mxu0 0
    %1098 = vmatpush1.bf16.msra.mxu0 0
    %1099 = vmatprep.mubr.bf16.mxu0 0
    %1100 = vmatmul.mubr.bf16.gmra.mrb[0].mxu0 %v1000
    %v1101 = vpop.f32.mrb[0].mxu0
    %v1102 = vadd.f32 0.0, %v1101
    %v1103 = vpop.f32.mrb[0].mxu0
    %v1104 = vpop.f32.mrb[0].mxu0
    %v1105 = vadd.f32 0.0, %v1104
    %v1106 = vpop.f32.mrb[0].mxu0
    %1107 = vmatprep.mubr.bf16.mxu0 0
    %1108 = vmatmul.mubr.bf16.gmra.mrb[0].mxu0 %v1001
    %v1109 = vpop.f32.mrb[0].mxu0
    %v1110 = vadd.f32 0.0, %v1109
    %v1111 = vpop.f32.mrb[0].mxu0
    %v1112 = vpop.f32.mrb[0].mxu0
    %v1113 = vadd.f32 0.0, %v1112
    %v1114 = vpop.f32.mrb[0].mxu0
    %1115 = vdwg.mxu0
    %v1116 = vadd.f32 %v930, %v1102
    %v1117 = vadd.f32 %v931, %v1105
    %v1118 = vadd.f32 %v932, %v1110
    %v1119 = vadd.f32 %v933, %v1113
    %s1120 = scalar_lea.vmem [#allocation6], 64
    %v1121 = vld [vmem:[%s1120] sm:$0xf]
    %v1122 = vld [vmem:[%s1120 + $0x4] sm:$0xf]
    %v1123 = vld [vmem:[%s1120 + $0x8] sm:$0xf]
    %v1124 = vld [vmem:[%s1120 + $0xc] sm:$0xf]
    %v1129 = vunpack.c.l.b16 %v1121
    %v1130 = vunpack.c.l.b16 %v1122
    %v1131 = vunpack.c.l.b16 %v1123
    %v1132 = vunpack.c.l.b16 %v1124
    %v1133 = vpack.c.b16 %v1130, %v1129
    %v1134 = vpack.c.b16 %v1132, %v1131
    %1137 = vmatprep.subr.bf16.mxu0 0
    %1138 = vmatpush1.bf16.msra.mxu0 %v362
    %1139 = vmatprep.subr.bf16.mxu0 0
    %1140 = vmatpush1.bf16.msra.mxu0 %v363
    %1141 = vmatprep.subr.bf16.mxu0 0
    %1142 = vmatpush1.bf16.msra.mxu0 %v364
    %1143 = vmatprep.subr.bf16.mxu0 0
    %1144 = vmatpush1.bf16.msra.mxu0 %v365
    %1145 = vmatprep.subr.bf16.mxu0 0
    %1146 = vmatpush1.bf16.msra.mxu0 %v366
    %1147 = vmatprep.subr.bf16.mxu0 0
    %1148 = vmatpush1.bf16.msra.mxu0 %v367
    %1149 = vmatprep.subr.bf16.mxu0 0
    %1150 = vmatpush1.bf16.msra.mxu0 %v368
    %1151 = vmatprep.subr.bf16.mxu0 0
    %1152 = vmatpush1.bf16.msra.mxu0 %v369
    %1153 = vmatprep.subr.bf16.mxu0 0
    %1154 = vmatpush1.bf16.msra.mxu0 0
    %1155 = vmatprep.subr.bf16.mxu0 0
    %1156 = vmatpush1.bf16.msra.mxu0 0
    %1157 = vmatprep.subr.bf16.mxu0 0
    %1158 = vmatpush1.bf16.msra.mxu0 0
    %1159 = vmatprep.subr.bf16.mxu0 0
    %1160 = vmatpush1.bf16.msra.mxu0 0
    %1161 = vmatprep.subr.bf16.mxu0 0
    %1162 = vmatpush1.bf16.msra.mxu0 0
    %1163 = vmatprep.subr.bf16.mxu0 0
    %1164 = vmatpush1.bf16.msra.mxu0 0
    %1165 = vmatprep.subr.bf16.mxu0 0
    %1166 = vmatpush1.bf16.msra.mxu0 0
    %1167 = vmatprep.subr.bf16.mxu0 0
    %1168 = vmatpush1.bf16.msra.mxu0 0
    %1169 = vmatprep.mubr.bf16.mxu0 0
    %1170 = vmatmul.mubr.bf16.gmra.mrb[0].mxu0 %v1133
    %v1171 = vpop.f32.mrb[0].mxu0
    %v1172 = vadd.f32 0.0, %v1171
    %v1173 = vpop.f32.mrb[0].mxu0
    %v1174 = vpop.f32.mrb[0].mxu0
    %v1175 = vadd.f32 0.0, %v1174
    %v1176 = vpop.f32.mrb[0].mxu0
    %1177 = vmatprep.mubr.bf16.mxu0 0
    %1178 = vmatmul.mubr.bf16.gmra.mrb[0].mxu0 %v1134
    %v1179 = vpop.f32.mrb[0].mxu0
    %v1180 = vadd.f32 0.0, %v1179
    %v1181 = vpop.f32.mrb[0].mxu0
    %v1182 = vpop.f32.mrb[0].mxu0
    %v1183 = vadd.f32 0.0, %v1182
    %v1184 = vpop.f32.mrb[0].mxu0
    %1185 = vdwg.mxu0
    %v1186 = vpack.c.bf16 %v1175, %v1172
    %v1187 = vpack.c.bf16 %v1183, %v1180
    %s1188 = scalar_lea.vmem [#allocation7], 256
    %v1189 = vld [vmem:[%s1188] sm:$0xf]
    %v1190 = vld [vmem:[%s1188 + $0x4] sm:$0xf]
    %v1191 = vld [vmem:[%s1188 + $0x8] sm:$0xf]
    %v1192 = vld [vmem:[%s1188 + $0xc] sm:$0xf]
    %v1193 = vld [vmem:[%s1188 + $0x10] sm:$0xf]
    %v1194 = vld [vmem:[%s1188 + $0x14] sm:$0xf]
    %v1195 = vld [vmem:[%s1188 + $0x18] sm:$0xf]
    %v1196 = vld [vmem:[%s1188 + $0x1c] sm:$0xf]
    %v1197 = vld [vmem:[%s1188 + $0x20] sm:$0xf]
    %v1198 = vld [vmem:[%s1188 + $0x24] sm:$0xf]
    %v1199 = vld [vmem:[%s1188 + $0x28] sm:$0xf]
    %v1200 = vld [vmem:[%s1188 + $0x2c] sm:$0xf]
    %v1201 = vld [vmem:[%s1188 + $0x30] sm:$0xf]
    %v1202 = vld [vmem:[%s1188 + $0x34] sm:$0xf]
    %v1203 = vld [vmem:[%s1188 + $0x38] sm:$0xf]
    %v1204 = vld [vmem:[%s1188 + $0x3c] sm:$0xf]
    %v1221 = vunpack.c.l.b16 %v1189
    %v1222 = vunpack.c.l.b16 %v1190
    %v1223 = vunpack.c.l.b16 %v1191
    %v1224 = vunpack.c.l.b16 %v1192
    %v1225 = vunpack.c.l.b16 %v1193
    %v1226 = vunpack.c.l.b16 %v1194
    %v1227 = vunpack.c.l.b16 %v1195
    %v1228 = vunpack.c.l.b16 %v1196
    %v1229 = vunpack.c.l.b16 %v1197
    %v1230 = vunpack.c.l.b16 %v1198
    %v1231 = vunpack.c.l.b16 %v1199
    %v1232 = vunpack.c.l.b16 %v1200
    %v1233 = vunpack.c.l.b16 %v1201
    %v1234 = vunpack.c.l.b16 %v1202
    %v1235 = vunpack.c.l.b16 %v1203
    %v1236 = vunpack.c.l.b16 %v1204
    %v1237 = vpack.c.b16 %v1222, %v1221
    %v1238 = vpack.c.b16 %v1224, %v1223
    %v1239 = vpack.c.b16 %v1226, %v1225
    %v1240 = vpack.c.b16 %v1228, %v1227
    %v1241 = vpack.c.b16 %v1230, %v1229
    %v1242 = vpack.c.b16 %v1232, %v1231
    %v1243 = vpack.c.b16 %v1234, %v1233
    %v1244 = vpack.c.b16 %v1236, %v1235
    %1253 = vmatprep.subr.bf16.mxu0 0
    %1254 = vmatpush1.bf16.msra.mxu0 %v1237
    %1255 = vmatprep.subr.bf16.mxu0 0
    %1256 = vmatpush1.bf16.msra.mxu0 %v1238
    %1257 = vmatprep.subr.bf16.mxu0 0
    %1258 = vmatpush1.bf16.msra.mxu0 %v1239
    %1259 = vmatprep.subr.bf16.mxu0 0
    %1260 = vmatpush1.bf16.msra.mxu0 %v1240
    %1261 = vmatprep.subr.bf16.mxu0 0
    %1262 = vmatpush1.bf16.msra.mxu0 %v1241
    %1263 = vmatprep.subr.bf16.mxu0 0
    %1264 = vmatpush1.bf16.msra.mxu0 %v1242
    %1265 = vmatprep.subr.bf16.mxu0 0
    %1266 = vmatpush1.bf16.msra.mxu0 %v1243
    %1267 = vmatprep.subr.bf16.mxu0 0
    %1268 = vmatpush1.bf16.msra.mxu0 %v1244
    %1269 = vmatprep.subr.bf16.mxu0 0
    %1270 = vmatpush1.bf16.msra.mxu0 0
    %1271 = vmatprep.subr.bf16.mxu0 0
    %1272 = vmatpush1.bf16.msra.mxu0 0
    %1273 = vmatprep.subr.bf16.mxu0 0
    %1274 = vmatpush1.bf16.msra.mxu0 0
    %1275 = vmatprep.subr.bf16.mxu0 0
    %1276 = vmatpush1.bf16.msra.mxu0 0
    %1277 = vmatprep.subr.bf16.mxu0 0
    %1278 = vmatpush1.bf16.msra.mxu0 0
    %1279 = vmatprep.subr.bf16.mxu0 0
    %1280 = vmatpush1.bf16.msra.mxu0 0
    %1281 = vmatprep.subr.bf16.mxu0 0
    %1282 = vmatpush1.bf16.msra.mxu0 0
    %1283 = vmatprep.subr.bf16.mxu0 0
    %1284 = vmatpush1.bf16.msra.mxu0 0
    %1285 = vmatprep.mubr.bf16.mxu0 0
    %1286 = vmatmul.mubr.bf16.gmra.mrb[0].mxu0 %v1186
    %v1287 = vpop.f32.mrb[0].mxu0
    %v1288 = vadd.f32 0.0, %v1287
    %v1289 = vpop.f32.mrb[0].mxu0
    %v1290 = vpop.f32.mrb[0].mxu0
    %v1291 = vadd.f32 0.0, %v1290
    %v1292 = vpop.f32.mrb[0].mxu0
    %1293 = vmatprep.mubr.bf16.mxu0 0
    %1294 = vmatmul.mubr.bf16.gmra.mrb[0].mxu0 %v1187
    %v1295 = vpop.f32.mrb[0].mxu0
    %v1296 = vadd.f32 0.0, %v1295
    %v1297 = vpop.f32.mrb[0].mxu0
    %v1298 = vpop.f32.mrb[0].mxu0
    %v1299 = vadd.f32 0.0, %v1298
    %v1300 = vpop.f32.mrb[0].mxu0
    %1301 = vdwg.mxu0
    %v1302 = vadd.f32 %v1116, %v1288
    %v1303 = vadd.f32 %v1117, %v1291
    %v1304 = vadd.f32 %v1118, %v1296
    %v1305 = vadd.f32 %v1119, %v1299
    %s1306 = scalar_lea.vmem [#allocation6], 80
    %v1307 = vld [vmem:[%s1306] sm:$0xf]
    %v1308 = vld [vmem:[%s1306 + $0x4] sm:$0xf]
    %v1309 = vld [vmem:[%s1306 + $0x8] sm:$0xf]
    %v1310 = vld [vmem:[%s1306 + $0xc] sm:$0xf]
    %v1315 = vunpack.c.l.b16 %v1307
    %v1316 = vunpack.c.l.b16 %v1308
    %v1317 = vunpack.c.l.b16 %v1309
    %v1318 = vunpack.c.l.b16 %v1310
    %v1319 = vpack.c.b16 %v1316, %v1315
    %v1320 = vpack.c.b16 %v1318, %v1317
    %1323 = vmatprep.subr.bf16.mxu0 0
    %1324 = vmatpush1.bf16.msra.mxu0 %v362
    %1325 = vmatprep.subr.bf16.mxu0 0
    %1326 = vmatpush1.bf16.msra.mxu0 %v363
    %1327 = vmatprep.subr.bf16.mxu0 0
    %1328 = vmatpush1.bf16.msra.mxu0 %v364
    %1329 = vmatprep.subr.bf16.mxu0 0
    %1330 = vmatpush1.bf16.msra.mxu0 %v365
    %1331 = vmatprep.subr.bf16.mxu0 0
    %1332 = vmatpush1.bf16.msra.mxu0 %v366
    %1333 = vmatprep.subr.bf16.mxu0 0
    %1334 = vmatpush1.bf16.msra.mxu0 %v367
    %1335 = vmatprep.subr.bf16.mxu0 0
    %1336 = vmatpush1.bf16.msra.mxu0 %v368
    %1337 = vmatprep.subr.bf16.mxu0 0
    %1338 = vmatpush1.bf16.msra.mxu0 %v369
    %1339 = vmatprep.subr.bf16.mxu0 0
    %1340 = vmatpush1.bf16.msra.mxu0 0
    %1341 = vmatprep.subr.bf16.mxu0 0
    %1342 = vmatpush1.bf16.msra.mxu0 0
    %1343 = vmatprep.subr.bf16.mxu0 0
    %1344 = vmatpush1.bf16.msra.mxu0 0
    %1345 = vmatprep.subr.bf16.mxu0 0
    %1346 = vmatpush1.bf16.msra.mxu0 0
    %1347 = vmatprep.subr.bf16.mxu0 0
    %1348 = vmatpush1.bf16.msra.mxu0 0
    %1349 = vmatprep.subr.bf16.mxu0 0
    %1350 = vmatpush1.bf16.msra.mxu0 0
    %1351 = vmatprep.subr.bf16.mxu0 0
    %1352 = vmatpush1.bf16.msra.mxu0 0
    %1353 = vmatprep.subr.bf16.mxu0 0
    %1354 = vmatpush1.bf16.msra.mxu0 0
    %1355 = vmatprep.mubr.bf16.mxu0 0
    %1356 = vmatmul.mubr.bf16.gmra.mrb[0].mxu0 %v1319
    %v1357 = vpop.f32.mrb[0].mxu0
    %v1358 = vadd.f32 0.0, %v1357
    %v1359 = vpop.f32.mrb[0].mxu0
    %v1360 = vpop.f32.mrb[0].mxu0
    %v1361 = vadd.f32 0.0, %v1360
    %v1362 = vpop.f32.mrb[0].mxu0
    %1363 = vmatprep.mubr.bf16.mxu0 0
    %1364 = vmatmul.mubr.bf16.gmra.mrb[0].mxu0 %v1320
    %v1365 = vpop.f32.mrb[0].mxu0
    %v1366 = vadd.f32 0.0, %v1365
    %v1367 = vpop.f32.mrb[0].mxu0
    %v1368 = vpop.f32.mrb[0].mxu0
    %v1369 = vadd.f32 0.0, %v1368
    %v1370 = vpop.f32.mrb[0].mxu0
    %1371 = vdwg.mxu0
    %v1372 = vpack.c.bf16 %v1361, %v1358
    %v1373 = vpack.c.bf16 %v1369, %v1366
    %s1374 = scalar_lea.vmem [#allocation7], 320
    %v1375 = vld [vmem:[%s1374] sm:$0xf]
    %v1376 = vld [vmem:[%s1374 + $0x4] sm:$0xf]
    %v1377 = vld [vmem:[%s1374 + $0x8] sm:$0xf]
    %v1378 = vld [vmem:[%s1374 + $0xc] sm:$0xf]
    %v1379 = vld [vmem:[%s1374 + $0x10] sm:$0xf]
    %v1380 = vld [vmem:[%s1374 + $0x14] sm:$0xf]
    %v1381 = vld [vmem:[%s1374 + $0x18] sm:$0xf]
    %v1382 = vld [vmem:[%s1374 + $0x1c] sm:$0xf]
    %v1383 = vld [vmem:[%s1374 + $0x20] sm:$0xf]
    %v1384 = vld [vmem:[%s1374 + $0x24] sm:$0xf]
    %v1385 = vld [vmem:[%s1374 + $0x28] sm:$0xf]
    %v1386 = vld [vmem:[%s1374 + $0x2c] sm:$0xf]
    %v1387 = vld [vmem:[%s1374 + $0x30] sm:$0xf]
    %v1388 = vld [vmem:[%s1374 + $0x34] sm:$0xf]
    %v1389 = vld [vmem:[%s1374 + $0x38] sm:$0xf]
    %v1390 = vld [vmem:[%s1374 + $0x3c] sm:$0xf]
    %v1407 = vunpack.c.l.b16 %v1375
    %v1408 = vunpack.c.l.b16 %v1376
    %v1409 = vunpack.c.l.b16 %v1377
    %v1410 = vunpack.c.l.b16 %v1378
    %v1411 = vunpack.c.l.b16 %v1379
    %v1412 = vunpack.c.l.b16 %v1380
    %v1413 = vunpack.c.l.b16 %v1381
    %v1414 = vunpack.c.l.b16 %v1382
    %v1415 = vunpack.c.l.b16 %v1383
    %v1416 = vunpack.c.l.b16 %v1384
    %v1417 = vunpack.c.l.b16 %v1385
    %v1418 = vunpack.c.l.b16 %v1386
    %v1419 = vunpack.c.l.b16 %v1387
    %v1420 = vunpack.c.l.b16 %v1388
    %v1421 = vunpack.c.l.b16 %v1389
    %v1422 = vunpack.c.l.b16 %v1390
    %v1423 = vpack.c.b16 %v1408, %v1407
    %v1424 = vpack.c.b16 %v1410, %v1409
    %v1425 = vpack.c.b16 %v1412, %v1411
    %v1426 = vpack.c.b16 %v1414, %v1413
    %v1427 = vpack.c.b16 %v1416, %v1415
    %v1428 = vpack.c.b16 %v1418, %v1417
    %v1429 = vpack.c.b16 %v1420, %v1419
    %v1430 = vpack.c.b16 %v1422, %v1421
    %1439 = vmatprep.subr.bf16.mxu0 0
    %1440 = vmatpush1.bf16.msra.mxu0 %v1423
    %1441 = vmatprep.subr.bf16.mxu0 0
    %1442 = vmatpush1.bf16.msra.mxu0 %v1424
    %1443 = vmatprep.subr.bf16.mxu0 0
    %1444 = vmatpush1.bf16.msra.mxu0 %v1425
    %1445 = vmatprep.subr.bf16.mxu0 0
    %1446 = vmatpush1.bf16.msra.mxu0 %v1426
    %1447 = vmatprep.subr.bf16.mxu0 0
    %1448 = vmatpush1.bf16.msra.mxu0 %v1427
    %1449 = vmatprep.subr.bf16.mxu0 0
    %1450 = vmatpush1.bf16.msra.mxu0 %v1428
    %1451 = vmatprep.subr.bf16.mxu0 0
    %1452 = vmatpush1.bf16.msra.mxu0 %v1429
    %1453 = vmatprep.subr.bf16.mxu0 0
    %1454 = vmatpush1.bf16.msra.mxu0 %v1430
    %1455 = vmatprep.subr.bf16.mxu0 0
    %1456 = vmatpush1.bf16.msra.mxu0 0
    %1457 = vmatprep.subr.bf16.mxu0 0
    %1458 = vmatpush1.bf16.msra.mxu0 0
    %1459 = vmatprep.subr.bf16.mxu0 0
    %1460 = vmatpush1.bf16.msra.mxu0 0
    %1461 = vmatprep.subr.bf16.mxu0 0
    %1462 = vmatpush1.bf16.msra.mxu0 0
    %1463 = vmatprep.subr.bf16.mxu0 0
    %1464 = vmatpush1.bf16.msra.mxu0 0
    %1465 = vmatprep.subr.bf16.mxu0 0
    %1466 = vmatpush1.bf16.msra.mxu0 0
    %1467 = vmatprep.subr.bf16.mxu0 0
    %1468 = vmatpush1.bf16.msra.mxu0 0
    %1469 = vmatprep.subr.bf16.mxu0 0
    %1470 = vmatpush1.bf16.msra.mxu0 0
    %1471 = vmatprep.mubr.bf16.mxu0 0
    %1472 = vmatmul.mubr.bf16.gmra.mrb[0].mxu0 %v1372
    %v1473 = vpop.f32.mrb[0].mxu0
    %v1474 = vadd.f32 0.0, %v1473
    %v1475 = vpop.f32.mrb[0].mxu0
    %v1476 = vpop.f32.mrb[0].mxu0
    %v1477 = vadd.f32 0.0, %v1476
    %v1478 = vpop.f32.mrb[0].mxu0
    %1479 = vmatprep.mubr.bf16.mxu0 0
    %1480 = vmatmul.mubr.bf16.gmra.mrb[0].mxu0 %v1373
    %v1481 = vpop.f32.mrb[0].mxu0
    %v1482 = vadd.f32 0.0, %v1481
    %v1483 = vpop.f32.mrb[0].mxu0
    %v1484 = vpop.f32.mrb[0].mxu0
    %v1485 = vadd.f32 0.0, %v1484
    %v1486 = vpop.f32.mrb[0].mxu0
    %1487 = vdwg.mxu0
    %v1488 = vadd.f32 %v1302, %v1474
    %v1489 = vadd.f32 %v1303, %v1477
    %v1490 = vadd.f32 %v1304, %v1482
    %v1491 = vadd.f32 %v1305, %v1485
    %s1492 = scalar_lea.vmem [#allocation6], 96
    %v1493 = vld [vmem:[%s1492] sm:$0xf]
    %v1494 = vld [vmem:[%s1492 + $0x4] sm:$0xf]
    %v1495 = vld [vmem:[%s1492 + $0x8] sm:$0xf]
    %v1496 = vld [vmem:[%s1492 + $0xc] sm:$0xf]
    %v1501 = vunpack.c.l.b16 %v1493
    %v1502 = vunpack.c.l.b16 %v1494
    %v1503 = vunpack.c.l.b16 %v1495
    %v1504 = vunpack.c.l.b16 %v1496
    %v1505 = vpack.c.b16 %v1502, %v1501
    %v1506 = vpack.c.b16 %v1504, %v1503
    %1509 = vmatprep.subr.bf16.mxu0 0
    %1510 = vmatpush1.bf16.msra.mxu0 %v362
    %1511 = vmatprep.subr.bf16.mxu0 0
    %1512 = vmatpush1.bf16.msra.mxu0 %v363
    %1513 = vmatprep.subr.bf16.mxu0 0
    %1514 = vmatpush1.bf16.msra.mxu0 %v364
    %1515 = vmatprep.subr.bf16.mxu0 0
    %1516 = vmatpush1.bf16.msra.mxu0 %v365
    %1517 = vmatprep.subr.bf16.mxu0 0
    %1518 = vmatpush1.bf16.msra.mxu0 %v366
    %1519 = vmatprep.subr.bf16.mxu0 0
    %1520 = vmatpush1.bf16.msra.mxu0 %v367
    %1521 = vmatprep.subr.bf16.mxu0 0
    %1522 = vmatpush1.bf16.msra.mxu0 %v368
    %1523 = vmatprep.subr.bf16.mxu0 0
    %1524 = vmatpush1.bf16.msra.mxu0 %v369
    %1525 = vmatprep.subr.bf16.mxu0 0
    %1526 = vmatpush1.bf16.msra.mxu0 0
    %1527 = vmatprep.subr.bf16.mxu0 0
    %1528 = vmatpush1.bf16.msra.mxu0 0
    %1529 = vmatprep.subr.bf16.mxu0 0
    %1530 = vmatpush1.bf16.msra.mxu0 0
    %1531 = vmatprep.subr.bf16.mxu0 0
    %1532 = vmatpush1.bf16.msra.mxu0 0
    %1533 = vmatprep.subr.bf16.mxu0 0
    %1534 = vmatpush1.bf16.msra.mxu0 0
    %1535 = vmatprep.subr.bf16.mxu0 0
    %1536 = vmatpush1.bf16.msra.mxu0 0
    %1537 = vmatprep.subr.bf16.mxu0 0
    %1538 = vmatpush1.bf16.msra.mxu0 0
    %1539 = vmatprep.subr.bf16.mxu0 0
    %1540 = vmatpush1.bf16.msra.mxu0 0
    %1541 = vmatprep.mubr.bf16.mxu0 0
    %1542 = vmatmul.mubr.bf16.gmra.mrb[0].mxu0 %v1505
    %v1543 = vpop.f32.mrb[0].mxu0
    %v1544 = vadd.f32 0.0, %v1543
    %v1545 = vpop.f32.mrb[0].mxu0
    %v1546 = vpop.f32.mrb[0].mxu0
    %v1547 = vadd.f32 0.0, %v1546
    %v1548 = vpop.f32.mrb[0].mxu0
    %1549 = vmatprep.mubr.bf16.mxu0 0
    %1550 = vmatmul.mubr.bf16.gmra.mrb[0].mxu0 %v1506
    %v1551 = vpop.f32.mrb[0].mxu0
    %v1552 = vadd.f32 0.0, %v1551
    %v1553 = vpop.f32.mrb[0].mxu0
    %v1554 = vpop.f32.mrb[0].mxu0
    %v1555 = vadd.f32 0.0, %v1554
    %v1556 = vpop.f32.mrb[0].mxu0
    %1557 = vdwg.mxu0
    %v1558 = vpack.c.bf16 %v1547, %v1544
    %v1559 = vpack.c.bf16 %v1555, %v1552
    %s1560 = scalar_lea.vmem [#allocation7], 384
    %v1561 = vld [vmem:[%s1560] sm:$0xf]
    %v1562 = vld [vmem:[%s1560 + $0x4] sm:$0xf]
    %v1563 = vld [vmem:[%s1560 + $0x8] sm:$0xf]
    %v1564 = vld [vmem:[%s1560 + $0xc] sm:$0xf]
    %v1565 = vld [vmem:[%s1560 + $0x10] sm:$0xf]
    %v1566 = vld [vmem:[%s1560 + $0x14] sm:$0xf]
    %v1567 = vld [vmem:[%s1560 + $0x18] sm:$0xf]
    %v1568 = vld [vmem:[%s1560 + $0x1c] sm:$0xf]
    %v1569 = vld [vmem:[%s1560 + $0x20] sm:$0xf]
    %v1570 = vld [vmem:[%s1560 + $0x24] sm:$0xf]
    %v1571 = vld [vmem:[%s1560 + $0x28] sm:$0xf]
    %v1572 = vld [vmem:[%s1560 + $0x2c] sm:$0xf]
    %v1573 = vld [vmem:[%s1560 + $0x30] sm:$0xf]
    %v1574 = vld [vmem:[%s1560 + $0x34] sm:$0xf]
    %v1575 = vld [vmem:[%s1560 + $0x38] sm:$0xf]
    %v1576 = vld [vmem:[%s1560 + $0x3c] sm:$0xf]
    %v1593 = vunpack.c.l.b16 %v1561
    %v1594 = vunpack.c.l.b16 %v1562
    %v1595 = vunpack.c.l.b16 %v1563
    %v1596 = vunpack.c.l.b16 %v1564
    %v1597 = vunpack.c.l.b16 %v1565
    %v1598 = vunpack.c.l.b16 %v1566
    %v1599 = vunpack.c.l.b16 %v1567
    %v1600 = vunpack.c.l.b16 %v1568
    %v1601 = vunpack.c.l.b16 %v1569
    %v1602 = vunpack.c.l.b16 %v1570
    %v1603 = vunpack.c.l.b16 %v1571
    %v1604 = vunpack.c.l.b16 %v1572
    %v1605 = vunpack.c.l.b16 %v1573
    %v1606 = vunpack.c.l.b16 %v1574
    %v1607 = vunpack.c.l.b16 %v1575
    %v1608 = vunpack.c.l.b16 %v1576
    %v1609 = vpack.c.b16 %v1594, %v1593
    %v1610 = vpack.c.b16 %v1596, %v1595
    %v1611 = vpack.c.b16 %v1598, %v1597
    %v1612 = vpack.c.b16 %v1600, %v1599
    %v1613 = vpack.c.b16 %v1602, %v1601
    %v1614 = vpack.c.b16 %v1604, %v1603
    %v1615 = vpack.c.b16 %v1606, %v1605
    %v1616 = vpack.c.b16 %v1608, %v1607
    %1625 = vmatprep.subr.bf16.mxu0 0
    %1626 = vmatpush1.bf16.msra.mxu0 %v1609
    %1627 = vmatprep.subr.bf16.mxu0 0
    %1628 = vmatpush1.bf16.msra.mxu0 %v1610
    %1629 = vmatprep.subr.bf16.mxu0 0
    %1630 = vmatpush1.bf16.msra.mxu0 %v1611
    %1631 = vmatprep.subr.bf16.mxu0 0
    %1632 = vmatpush1.bf16.msra.mxu0 %v1612
    %1633 = vmatprep.subr.bf16.mxu0 0
    %1634 = vmatpush1.bf16.msra.mxu0 %v1613
    %1635 = vmatprep.subr.bf16.mxu0 0
    %1636 = vmatpush1.bf16.msra.mxu0 %v1614
    %1637 = vmatprep.subr.bf16.mxu0 0
    %1638 = vmatpush1.bf16.msra.mxu0 %v1615
    %1639 = vmatprep.subr.bf16.mxu0 0
    %1640 = vmatpush1.bf16.msra.mxu0 %v1616
    %1641 = vmatprep.subr.bf16.mxu0 0
    %1642 = vmatpush1.bf16.msra.mxu0 0
    %1643 = vmatprep.subr.bf16.mxu0 0
    %1644 = vmatpush1.bf16.msra.mxu0 0
    %1645 = vmatprep.subr.bf16.mxu0 0
    %1646 = vmatpush1.bf16.msra.mxu0 0
    %1647 = vmatprep.subr.bf16.mxu0 0
    %1648 = vmatpush1.bf16.msra.mxu0 0
    %1649 = vmatprep.subr.bf16.mxu0 0
    %1650 = vmatpush1.bf16.msra.mxu0 0
    %1651 = vmatprep.subr.bf16.mxu0 0
    %1652 = vmatpush1.bf16.msra.mxu0 0
    %1653 = vmatprep.subr.bf16.mxu0 0
    %1654 = vmatpush1.bf16.msra.mxu0 0
    %1655 = vmatprep.subr.bf16.mxu0 0
    %1656 = vmatpush1.bf16.msra.mxu0 0
    %1657 = vmatprep.mubr.bf16.mxu0 0
    %1658 = vmatmul.mubr.bf16.gmra.mrb[0].mxu0 %v1558
    %v1659 = vpop.f32.mrb[0].mxu0
    %v1660 = vadd.f32 0.0, %v1659
    %v1661 = vpop.f32.mrb[0].mxu0
    %v1662 = vpop.f32.mrb[0].mxu0
    %v1663 = vadd.f32 0.0, %v1662
    %v1664 = vpop.f32.mrb[0].mxu0
    %1665 = vmatprep.mubr.bf16.mxu0 0
    %1666 = vmatmul.mubr.bf16.gmra.mrb[0].mxu0 %v1559
    %v1667 = vpop.f32.mrb[0].mxu0
    %v1668 = vadd.f32 0.0, %v1667
    %v1669 = vpop.f32.mrb[0].mxu0
    %v1670 = vpop.f32.mrb[0].mxu0
    %v1671 = vadd.f32 0.0, %v1670
    %v1672 = vpop.f32.mrb[0].mxu0
    %1673 = vdwg.mxu0
    %v1674 = vadd.f32 %v1488, %v1660
    %v1675 = vadd.f32 %v1489, %v1663
    %v1676 = vadd.f32 %v1490, %v1668
    %v1677 = vadd.f32 %v1491, %v1671
    %s1678 = scalar_lea.vmem [#allocation6], 112
    %v1679 = vld [vmem:[%s1678] sm:$0xf]
    %v1680 = vld [vmem:[%s1678 + $0x4] sm:$0xf]
    %v1681 = vld [vmem:[%s1678 + $0x8] sm:$0xf]
    %v1682 = vld [vmem:[%s1678 + $0xc] sm:$0xf]
    %v1687 = vunpack.c.l.b16 %v1679
    %v1688 = vunpack.c.l.b16 %v1680
    %v1689 = vunpack.c.l.b16 %v1681
    %v1690 = vunpack.c.l.b16 %v1682
    %v1691 = vpack.c.b16 %v1688, %v1687
    %v1692 = vpack.c.b16 %v1690, %v1689
    %1695 = vmatprep.subr.bf16.mxu0 0
    %1696 = vmatpush1.bf16.msra.mxu0 %v362
    %1697 = vmatprep.subr.bf16.mxu0 0
    %1698 = vmatpush1.bf16.msra.mxu0 %v363
    %1699 = vmatprep.subr.bf16.mxu0 0
    %1700 = vmatpush1.bf16.msra.mxu0 %v364
    %1701 = vmatprep.subr.bf16.mxu0 0
    %1702 = vmatpush1.bf16.msra.mxu0 %v365
    %1703 = vmatprep.subr.bf16.mxu0 0
    %1704 = vmatpush1.bf16.msra.mxu0 %v366
    %1705 = vmatprep.subr.bf16.mxu0 0
    %1706 = vmatpush1.bf16.msra.mxu0 %v367
    %1707 = vmatprep.subr.bf16.mxu0 0
    %1708 = vmatpush1.bf16.msra.mxu0 %v368
    %1709 = vmatprep.subr.bf16.mxu0 0
    %1710 = vmatpush1.bf16.msra.mxu0 %v369
    %1711 = vmatprep.subr.bf16.mxu0 0
    %1712 = vmatpush1.bf16.msra.mxu0 0
    %1713 = vmatprep.subr.bf16.mxu0 0
    %1714 = vmatpush1.bf16.msra.mxu0 0
    %1715 = vmatprep.subr.bf16.mxu0 0
    %1716 = vmatpush1.bf16.msra.mxu0 0
    %1717 = vmatprep.subr.bf16.mxu0 0
    %1718 = vmatpush1.bf16.msra.mxu0 0
    %1719 = vmatprep.subr.bf16.mxu0 0
    %1720 = vmatpush1.bf16.msra.mxu0 0
    %1721 = vmatprep.subr.bf16.mxu0 0
    %1722 = vmatpush1.bf16.msra.mxu0 0
    %1723 = vmatprep.subr.bf16.mxu0 0
    %1724 = vmatpush1.bf16.msra.mxu0 0
    %1725 = vmatprep.subr.bf16.mxu0 0
    %1726 = vmatpush1.bf16.msra.mxu0 0
    %1727 = vmatprep.mubr.bf16.mxu0 0
    %1728 = vmatmul.mubr.bf16.gmra.mrb[0].mxu0 %v1691
    %v1729 = vpop.f32.mrb[0].mxu0
    %v1730 = vadd.f32 0.0, %v1729
    %v1731 = vpop.f32.mrb[0].mxu0
    %v1732 = vpop.f32.mrb[0].mxu0
    %v1733 = vadd.f32 0.0, %v1732
    %v1734 = vpop.f32.mrb[0].mxu0
    %1735 = vmatprep.mubr.bf16.mxu0 0
    %1736 = vmatmul.mubr.bf16.gmra.mrb[0].mxu0 %v1692
    %v1737 = vpop.f32.mrb[0].mxu0
    %v1738 = vadd.f32 0.0, %v1737
    %v1739 = vpop.f32.mrb[0].mxu0
    %v1740 = vpop.f32.mrb[0].mxu0
    %v1741 = vadd.f32 0.0, %v1740
    %v1742 = vpop.f32.mrb[0].mxu0
    %1743 = vdwg.mxu0
    %v1744 = vpack.c.bf16 %v1733, %v1730
    %v1745 = vpack.c.bf16 %v1741, %v1738
    %s1746 = scalar_lea.vmem [#allocation7], 448
    %v1747 = vld [vmem:[%s1746] sm:$0xf]
    %v1748 = vld [vmem:[%s1746 + $0x4] sm:$0xf]
    %v1749 = vld [vmem:[%s1746 + $0x8] sm:$0xf]
    %v1750 = vld [vmem:[%s1746 + $0xc] sm:$0xf]
    %v1751 = vld [vmem:[%s1746 + $0x10] sm:$0xf]
    %v1752 = vld [vmem:[%s1746 + $0x14] sm:$0xf]
    %v1753 = vld [vmem:[%s1746 + $0x18] sm:$0xf]
    %v1754 = vld [vmem:[%s1746 + $0x1c] sm:$0xf]
    %v1755 = vld [vmem:[%s1746 + $0x20] sm:$0xf]
    %v1756 = vld [vmem:[%s1746 + $0x24] sm:$0xf]
    %v1757 = vld [vmem:[%s1746 + $0x28] sm:$0xf]
    %v1758 = vld [vmem:[%s1746 + $0x2c] sm:$0xf]
    %v1759 = vld [vmem:[%s1746 + $0x30] sm:$0xf]
    %v1760 = vld [vmem:[%s1746 + $0x34] sm:$0xf]
    %v1761 = vld [vmem:[%s1746 + $0x38] sm:$0xf]
    %v1762 = vld [vmem:[%s1746 + $0x3c] sm:$0xf]
    %v1779 = vunpack.c.l.b16 %v1747
    %v1780 = vunpack.c.l.b16 %v1748
    %v1781 = vunpack.c.l.b16 %v1749
    %v1782 = vunpack.c.l.b16 %v1750
    %v1783 = vunpack.c.l.b16 %v1751
    %v1784 = vunpack.c.l.b16 %v1752
    %v1785 = vunpack.c.l.b16 %v1753
    %v1786 = vunpack.c.l.b16 %v1754
    %v1787 = vunpack.c.l.b16 %v1755
    %v1788 = vunpack.c.l.b16 %v1756
    %v1789 = vunpack.c.l.b16 %v1757
    %v1790 = vunpack.c.l.b16 %v1758
    %v1791 = vunpack.c.l.b16 %v1759
    %v1792 = vunpack.c.l.b16 %v1760
    %v1793 = vunpack.c.l.b16 %v1761
    %v1794 = vunpack.c.l.b16 %v1762
    %v1795 = vpack.c.b16 %v1780, %v1779
    %v1796 = vpack.c.b16 %v1782, %v1781
    %v1797 = vpack.c.b16 %v1784, %v1783
    %v1798 = vpack.c.b16 %v1786, %v1785
    %v1799 = vpack.c.b16 %v1788, %v1787
    %v1800 = vpack.c.b16 %v1790, %v1789
    %v1801 = vpack.c.b16 %v1792, %v1791
    %v1802 = vpack.c.b16 %v1794, %v1793
    %1811 = vmatprep.subr.bf16.mxu0 0
    %1812 = vmatpush1.bf16.msra.mxu0 %v1795
    %1813 = vmatprep.subr.bf16.mxu0 0
    %1814 = vmatpush1.bf16.msra.mxu0 %v1796
    %1815 = vmatprep.subr.bf16.mxu0 0
    %1816 = vmatpush1.bf16.msra.mxu0 %v1797
    %1817 = vmatprep.subr.bf16.mxu0 0
    %1818 = vmatpush1.bf16.msra.mxu0 %v1798
    %1819 = vmatprep.subr.bf16.mxu0 0
    %1820 = vmatpush1.bf16.msra.mxu0 %v1799
    %1821 = vmatprep.subr.bf16.mxu0 0
    %1822 = vmatpush1.bf16.msra.mxu0 %v1800
    %1823 = vmatprep.subr.bf16.mxu0 0
    %1824 = vmatpush1.bf16.msra.mxu0 %v1801
    %1825 = vmatprep.subr.bf16.mxu0 0
    %1826 = vmatpush1.bf16.msra.mxu0 %v1802
    %1827 = vmatprep.subr.bf16.mxu0 0
    %1828 = vmatpush1.bf16.msra.mxu0 0
    %1829 = vmatprep.subr.bf16.mxu0 0
    %1830 = vmatpush1.bf16.msra.mxu0 0
    %1831 = vmatprep.subr.bf16.mxu0 0
    %1832 = vmatpush1.bf16.msra.mxu0 0
    %1833 = vmatprep.subr.bf16.mxu0 0
    %1834 = vmatpush1.bf16.msra.mxu0 0
    %1835 = vmatprep.subr.bf16.mxu0 0
    %1836 = vmatpush1.bf16.msra.mxu0 0
    %1837 = vmatprep.subr.bf16.mxu0 0
    %1838 = vmatpush1.bf16.msra.mxu0 0
    %1839 = vmatprep.subr.bf16.mxu0 0
    %1840 = vmatpush1.bf16.msra.mxu0 0
    %1841 = vmatprep.subr.bf16.mxu0 0
    %1842 = vmatpush1.bf16.msra.mxu0 0
    %1843 = vmatprep.mubr.bf16.mxu0 0
    %1844 = vmatmul.mubr.bf16.gmra.mrb[0].mxu0 %v1744
    %v1845 = vpop.f32.mrb[0].mxu0
    %v1846 = vadd.f32 0.0, %v1845
    %v1847 = vpop.f32.mrb[0].mxu0
    %v1848 = vpop.f32.mrb[0].mxu0
    %v1849 = vadd.f32 0.0, %v1848
    %v1850 = vpop.f32.mrb[0].mxu0
    %1851 = vmatprep.mubr.bf16.mxu0 0
    %1852 = vmatmul.mubr.bf16.gmra.mrb[0].mxu0 %v1745
    %v1853 = vpop.f32.mrb[0].mxu0
    %v1854 = vadd.f32 0.0, %v1853
    %v1855 = vpop.f32.mrb[0].mxu0
    %v1856 = vpop.f32.mrb[0].mxu0
    %v1857 = vadd.f32 0.0, %v1856
    %v1858 = vpop.f32.mrb[0].mxu0
    %1859 = vdwg.mxu0
    %v1860 = vadd.f32 %v1674, %v1846
    %v1861 = vadd.f32 %v1675, %v1849
    %v1862 = vadd.f32 %v1676, %v1854
    %v1863 = vadd.f32 %v1677, %v1857
    %s1864 = scalar_lea.vmem [#allocation6], 128
    %v1865 = vld [vmem:[%s1864] sm:$0xf]
    %v1866 = vld [vmem:[%s1864 + $0x4] sm:$0xf]
    %v1867 = vld [vmem:[%s1864 + $0x8] sm:$0xf]
    %v1868 = vld [vmem:[%s1864 + $0xc] sm:$0xf]
    %v1873 = vunpack.c.l.b16 %v1865
    %v1874 = vunpack.c.l.b16 %v1866
    %v1875 = vunpack.c.l.b16 %v1867
    %v1876 = vunpack.c.l.b16 %v1868
    %v1877 = vpack.c.b16 %v1874, %v1873
    %v1878 = vpack.c.b16 %v1876, %v1875
    %1881 = vmatprep.subr.bf16.mxu0 0
    %1882 = vmatpush1.bf16.msra.mxu0 %v362
    %1883 = vmatprep.subr.bf16.mxu0 0
    %1884 = vmatpush1.bf16.msra.mxu0 %v363
    %1885 = vmatprep.subr.bf16.mxu0 0
    %1886 = vmatpush1.bf16.msra.mxu0 %v364
    %1887 = vmatprep.subr.bf16.mxu0 0
    %1888 = vmatpush1.bf16.msra.mxu0 %v365
    %1889 = vmatprep.subr.bf16.mxu0 0
    %1890 = vmatpush1.bf16.msra.mxu0 %v366
    %1891 = vmatprep.subr.bf16.mxu0 0
    %1892 = vmatpush1.bf16.msra.mxu0 %v367
    %1893 = vmatprep.subr.bf16.mxu0 0
    %1894 = vmatpush1.bf16.msra.mxu0 %v368
    %1895 = vmatprep.subr.bf16.mxu0 0
    %1896 = vmatpush1.bf16.msra.mxu0 %v369
    %1897 = vmatprep.subr.bf16.mxu0 0
    %1898 = vmatpush1.bf16.msra.mxu0 0
    %1899 = vmatprep.subr.bf16.mxu0 0
    %1900 = vmatpush1.bf16.msra.mxu0 0
    %1901 = vmatprep.subr.bf16.mxu0 0
    %1902 = vmatpush1.bf16.msra.mxu0 0
    %1903 = vmatprep.subr.bf16.mxu0 0
    %1904 = vmatpush1.bf16.msra.mxu0 0
    %1905 = vmatprep.subr.bf16.mxu0 0
    %1906 = vmatpush1.bf16.msra.mxu0 0
    %1907 = vmatprep.subr.bf16.mxu0 0
    %1908 = vmatpush1.bf16.msra.mxu0 0
    %1909 = vmatprep.subr.bf16.mxu0 0
    %1910 = vmatpush1.bf16.msra.mxu0 0
    %1911 = vmatprep.subr.bf16.mxu0 0
    %1912 = vmatpush1.bf16.msra.mxu0 0
    %1913 = vmatprep.mubr.bf16.mxu0 0
    %1914 = vmatmul.mubr.bf16.gmra.mrb[0].mxu0 %v1877
    %v1915 = vpop.f32.mrb[0].mxu0
    %v1916 = vadd.f32 0.0, %v1915
    %v1917 = vpop.f32.mrb[0].mxu0
    %v1918 = vpop.f32.mrb[0].mxu0
    %v1919 = vadd.f32 0.0, %v1918
    %v1920 = vpop.f32.mrb[0].mxu0
    %1921 = vmatprep.mubr.bf16.mxu0 0
    %1922 = vmatmul.mubr.bf16.gmra.mrb[0].mxu0 %v1878
    %v1923 = vpop.f32.mrb[0].mxu0
    %v1924 = vadd.f32 0.0, %v1923
    %v1925 = vpop.f32.mrb[0].mxu0
    %v1926 = vpop.f32.mrb[0].mxu0
    %v1927 = vadd.f32 0.0, %v1926
    %v1928 = vpop.f32.mrb[0].mxu0
    %1929 = vdwg.mxu0
    %v1930 = vpack.c.bf16 %v1919, %v1916
    %v1931 = vpack.c.bf16 %v1927, %v1924
    %s1932 = scalar_lea.vmem [#allocation7], 512
    %v1933 = vld [vmem:[%s1932] sm:$0xf]
    %v1934 = vld [vmem:[%s1932 + $0x4] sm:$0xf]
    %v1935 = vld [vmem:[%s1932 + $0x8] sm:$0xf]
    %v1936 = vld [vmem:[%s1932 + $0xc] sm:$0xf]
    %v1937 = vld [vmem:[%s1932 + $0x10] sm:$0xf]
    %v1938 = vld [vmem:[%s1932 + $0x14] sm:$0xf]
    %v1939 = vld [vmem:[%s1932 + $0x18] sm:$0xf]
    %v1940 = vld [vmem:[%s1932 + $0x1c] sm:$0xf]
    %v1941 = vld [vmem:[%s1932 + $0x20] sm:$0xf]
    %v1942 = vld [vmem:[%s1932 + $0x24] sm:$0xf]
    %v1943 = vld [vmem:[%s1932 + $0x28] sm:$0xf]
    %v1944 = vld [vmem:[%s1932 + $0x2c] sm:$0xf]
    %v1945 = vld [vmem:[%s1932 + $0x30] sm:$0xf]
    %v1946 = vld [vmem:[%s1932 + $0x34] sm:$0xf]
    %v1947 = vld [vmem:[%s1932 + $0x38] sm:$0xf]
    %v1948 = vld [vmem:[%s1932 + $0x3c] sm:$0xf]
    %v1965 = vunpack.c.l.b16 %v1933
    %v1966 = vunpack.c.l.b16 %v1934
    %v1967 = vunpack.c.l.b16 %v1935
    %v1968 = vunpack.c.l.b16 %v1936
    %v1969 = vunpack.c.l.b16 %v1937
    %v1970 = vunpack.c.l.b16 %v1938
    %v1971 = vunpack.c.l.b16 %v1939
    %v1972 = vunpack.c.l.b16 %v1940
    %v1973 = vunpack.c.l.b16 %v1941
    %v1974 = vunpack.c.l.b16 %v1942
    %v1975 = vunpack.c.l.b16 %v1943
    %v1976 = vunpack.c.l.b16 %v1944
    %v1977 = vunpack.c.l.b16 %v1945
    %v1978 = vunpack.c.l.b16 %v1946
    %v1979 = vunpack.c.l.b16 %v1947
    %v1980 = vunpack.c.l.b16 %v1948
    %v1981 = vpack.c.b16 %v1966, %v1965
    %v1982 = vpack.c.b16 %v1968, %v1967
    %v1983 = vpack.c.b16 %v1970, %v1969
    %v1984 = vpack.c.b16 %v1972, %v1971
    %v1985 = vpack.c.b16 %v1974, %v1973
    %v1986 = vpack.c.b16 %v1976, %v1975
    %v1987 = vpack.c.b16 %v1978, %v1977
    %v1988 = vpack.c.b16 %v1980, %v1979
    %1997 = vmatprep.subr.bf16.mxu0 0
    %1998 = vmatpush1.bf16.msra.mxu0 %v1981
    %1999 = vmatprep.subr.bf16.mxu0 0
    %2000 = vmatpush1.bf16.msra.mxu0 %v1982
    %2001 = vmatprep.subr.bf16.mxu0 0
    %2002 = vmatpush1.bf16.msra.mxu0 %v1983
    %2003 = vmatprep.subr.bf16.mxu0 0
    %2004 = vmatpush1.bf16.msra.mxu0 %v1984
    %2005 = vmatprep.subr.bf16.mxu0 0
    %2006 = vmatpush1.bf16.msra.mxu0 %v1985
    %2007 = vmatprep.subr.bf16.mxu0 0
    %2008 = vmatpush1.bf16.msra.mxu0 %v1986
    %2009 = vmatprep.subr.bf16.mxu0 0
    %2010 = vmatpush1.bf16.msra.mxu0 %v1987
    %2011 = vmatprep.subr.bf16.mxu0 0
    %2012 = vmatpush1.bf16.msra.mxu0 %v1988
    %2013 = vmatprep.subr.bf16.mxu0 0
    %2014 = vmatpush1.bf16.msra.mxu0 0
    %2015 = vmatprep.subr.bf16.mxu0 0
    %2016 = vmatpush1.bf16.msra.mxu0 0
    %2017 = vmatprep.subr.bf16.mxu0 0
    %2018 = vmatpush1.bf16.msra.mxu0 0
    %2019 = vmatprep.subr.bf16.mxu0 0
    %2020 = vmatpush1.bf16.msra.mxu0 0
    %2021 = vmatprep.subr.bf16.mxu0 0
    %2022 = vmatpush1.bf16.msra.mxu0 0
    %2023 = vmatprep.subr.bf16.mxu0 0
    %2024 = vmatpush1.bf16.msra.mxu0 0
    %2025 = vmatprep.subr.bf16.mxu0 0
    %2026 = vmatpush1.bf16.msra.mxu0 0
    %2027 = vmatprep.subr.bf16.mxu0 0
    %2028 = vmatpush1.bf16.msra.mxu0 0
    %2029 = vmatprep.mubr.bf16.mxu0 0
    %2030 = vmatmul.mubr.bf16.gmra.mrb[0].mxu0 %v1930
    %v2031 = vpop.f32.mrb[0].mxu0
    %v2032 = vadd.f32 0.0, %v2031
    %v2033 = vpop.f32.mrb[0].mxu0
    %v2034 = vpop.f32.mrb[0].mxu0
    %v2035 = vadd.f32 0.0, %v2034
    %v2036 = vpop.f32.mrb[0].mxu0
    %2037 = vmatprep.mubr.bf16.mxu0 0
    %2038 = vmatmul.mubr.bf16.gmra.mrb[0].mxu0 %v1931
    %v2039 = vpop.f32.mrb[0].mxu0
    %v2040 = vadd.f32 0.0, %v2039
    %v2041 = vpop.f32.mrb[0].mxu0
    %v2042 = vpop.f32.mrb[0].mxu0
    %v2043 = vadd.f32 0.0, %v2042
    %v2044 = vpop.f32.mrb[0].mxu0
    %2045 = vdwg.mxu0
    %v2046 = vadd.f32 %v1860, %v2032
    %v2047 = vadd.f32 %v1861, %v2035
    %v2048 = vadd.f32 %v1862, %v2040
    %v2049 = vadd.f32 %v1863, %v2043
    %vm2050 = vcmp.ge.f32.partialorder %v2046, 0.0
    %vm2051 = vcmp.ge.f32.partialorder %v2047, 0.0
    %vm2052 = vcmp.ge.f32.partialorder %v2048, 0.0
    %vm2053 = vcmp.ge.f32.partialorder %v2049, 0.0
    %v2054 = vmul.f32 %v2046, 0.2
    %v2055 = vmul.f32 %v2047, 0.2
    %v2056 = vmul.f32 %v2048, 0.2
    %v2057 = vmul.f32 %v2049, 0.2
    %v2058 = vsel %vm2050, %v2046, %v2054
    %v2059 = vsel %vm2051, %v2047, %v2055
    %v2060 = vsel %vm2052, %v2048, %v2056
    %v2061 = vsel %vm2053, %v2049, %v2057
    %v2062 = vld [vmem:[%s6] sm:$0x3]
    %vm2063 = vcmask 261120
    %v2065 = vsel %vm2063, %v2062, 0
    %2067 = vmatprep.subr.mxu0 0.0
    %2068 = vmatpush1.msra.mxu0 %v2058
    %2069 = vmatprep.subr.mxu0 0.0
    %2070 = vmatpush1.msra.mxu0 %v2059
    %2071 = vmatprep.subr.mxu0 0.0
    %2072 = vmatpush1.msra.mxu0 %v2060
    %2073 = vmatprep.subr.mxu0 0.0
    %2074 = vmatpush1.msra.mxu0 %v2061
    %2075 = vmatprep.subr.mxu0 0.0
    %2076 = vmatpush1.msra.mxu0 0.0
    %2077 = vmatprep.subr.mxu0 0.0
    %2078 = vmatpush1.msra.mxu0 0.0
    %2079 = vmatprep.subr.mxu0 0.0
    %2080 = vmatpush1.msra.mxu0 0.0
    %2081 = vmatprep.subr.mxu0 0.0
    %2082 = vmatpush1.msra.mxu0 0.0
    %2083 = vmatprep.subr.mxu0 0.0
    %2084 = vmatpush1.msra.mxu0 0.0
    %2085 = vmatprep.subr.mxu0 0.0
    %2086 = vmatpush1.msra.mxu0 0.0
    %2087 = vmatprep.subr.mxu0 0.0
    %2088 = vmatpush1.msra.mxu0 0.0
    %2089 = vmatprep.subr.mxu0 0.0
    %2090 = vmatpush1.msra.mxu0 0.0
    %2091 = vmatprep.subr.mxu0 0.0
    %2092 = vmatpush1.msra.mxu0 0.0
    %2093 = vmatprep.subr.mxu0 0.0
    %2094 = vmatpush1.msra.mxu0 0.0
    %2095 = vmatprep.subr.mxu0 0.0
    %2096 = vmatpush1.msra.mxu0 0.0
    %2097 = vmatprep.subr.mxu0 0.0
    %2098 = vmatpush1.msra.mxu0 0.0
    %2099 = vmatprep.subr.mxu0 0.0
    %2100 = vmatpush1.msra.mxu0 0.0
    %2101 = vmatprep.subr.mxu0 0.0
    %2102 = vmatpush1.msra.mxu0 0.0
    %2103 = vmatprep.subr.mxu0 0.0
    %2104 = vmatpush1.msra.mxu0 0.0
    %2105 = vmatprep.subr.mxu0 0.0
    %2106 = vmatpush1.msra.mxu0 0.0
    %2107 = vmatprep.subr.mxu0 0.0
    %2108 = vmatpush1.msra.mxu0 0.0
    %2109 = vmatprep.subr.mxu0 0.0
    %2110 = vmatpush1.msra.mxu0 0.0
    %2111 = vmatprep.subr.mxu0 0.0
    %2112 = vmatpush1.msra.mxu0 0.0
    %2113 = vmatprep.subr.mxu0 0.0
    %2114 = vmatpush1.msra.mxu0 0.0
    %2115 = vmatprep.subr.mxu0 0.0
    %2116 = vmatpush1.msra.mxu0 0.0
    %2117 = vmatprep.subr.mxu0 0.0
    %2118 = vmatpush1.msra.mxu0 0.0
    %2119 = vmatprep.subr.mxu0 0.0
    %2120 = vmatpush1.msra.mxu0 0.0
    %2121 = vmatprep.subr.mxu0 0.0
    %2122 = vmatpush1.msra.mxu0 0.0
    %2123 = vmatprep.subr.mxu0 0.0
    %2124 = vmatpush1.msra.mxu0 0.0
    %2125 = vmatprep.subr.mxu0 0.0
    %2126 = vmatpush1.msra.mxu0 0.0
    %2127 = vmatprep.subr.mxu0 0.0
    %2128 = vmatpush1.msra.mxu0 0.0
    %2129 = vmatprep.subr.mxu0 0.0
    %2130 = vmatpush1.msra.mxu0 0.0
    %2131 = vmatprep.mubr.f32.mxu0 0.0
    %2132 = vmatmul.mubr.f32.gmra.mrb[0].mxu0 %v2065
    %v2133 = vpop.f32.mrb[0].mxu0
    %v2134 = vadd.f32 0.0, %v2133
    %v2135 = vpop.f32.mrb[0].mxu0
    %2136 = vdwg.mxu0
    %vm2137 = vcmask 1041408
    %v2138 = vsel %vm2137, %v2134, 0.0
    %2139 = vadd.xlane.f32.xlu0 %v2138
    %v2140 = vpop.xlane.xlu0 %2139
    %v2141 = vsub.f32 0.0, %v2140
    %v2142 = vmul.f32 %v2141, 1.442695
    %v2143 = vpow.pop %v2142
    %v2144 = vadd.f32 %v2143, 1.0
    %v2145 = vrcp.pop %v2144
    %v2146 = vmul.f32 1.0, %v2145
    %vm2147 = vcmask 1024
    %2148 = vst.msk [vmem:[%s7] sm:$0x3] %vm2147, %v2146
    // Predicated region
    $region46: #{tpu_custom_call.1} parent=1 // pred_check
      _
    $region47: #{tpu_custom_call.1} parent=1 // pred_check_branch
      %2150 = sbr.rel (0) target = $region49
    $region48: #{tpu_custom_call.1} parent=1 // pred_region
      _
    $region49: #{tpu_custom_call.1} parent=1 // pred_fallthru
      _
    // Predicated region
    $region50: #{tpu_custom_call.1} parent=1 // pred_check
      _
    $region51: #{tpu_custom_call.1} parent=1 // pred_check_branch
      %2152 = sbr.rel (0) target = $region53
    $region52: #{tpu_custom_call.1} parent=1 // pred_region
      _
    $region53: #{tpu_custom_call.1} parent=1 // pred_fallthru
      _
    %2153 = vsyncpa [#allocation3], 1
    %2154 = vsyncpa [#allocation5], 1
    %2155 = vsyncpa [#allocation8], 1

</llo_original>
